<compile_context>
chip_gen: v7x
topology: tpu7x:2x2x1
jax: 0.10.0
libtpu: 0.0.40
codegen_flags: <defaults>
</compile_context>

<pallas_src>
import functools

import jax
import jax.numpy as jnp
from jax.experimental import pallas as pl
from jax.experimental.pallas import tpu as pltpu


def mha_kernel(x_ref, wqkv_ref, wp_ref, bias_ref, mask_ref, o_ref, acc_ref,
               *, num_heads, head_size, seq_len, n_embd, bblk):
    """One grid step = (one batch block) x (one head).

    x_ref:     (bblk, T, C) bf16       resident across the head axis
    wqkv_ref:  (C, 3*hs)    bf16       this head's fused [Wq*scale | Wk | Wv]
    wp_ref:    (C, C)       bf16       full output projection (resident)
    bias_ref:  (1, C)       f32
    mask_ref:  (T, T)       f32        additive causal mask (0 / -1e30), resident
    o_ref:     (bblk, T, C)            written once, at the last head
    acc_ref:   (bblk*T, C)  bf16       per-head outputs concatenated along lanes
    """
    h = pl.program_id(1)
    hs = head_size
    M = bblk * seq_len

    # ---- fused per-head QKV projection (bf16 x bf16 -> f32 acc) -------------
    x2d = x_ref[...].reshape(M, n_embd)                       # free reshape
    qkv = jnp.dot(x2d, wqkv_ref[...],
                  preferred_element_type=jnp.float32)         # (M, 3*hs) f32
    qkv_bf = qkv.astype(jnp.bfloat16)                         # MXU operands only
    q = qkv_bf[:, 0 * hs:1 * hs].reshape(bblk, seq_len, hs)   # lane-aligned slices
    k = qkv_bf[:, 1 * hs:2 * hs].reshape(bblk, seq_len, hs)
    v = qkv_bf[:, 2 * hs:3 * hs].reshape(bblk, seq_len, hs)

    # ---- attention for all bblk batch rows of this head (batched MXU) -------
    # C**-0.5 score scale is pre-folded into Wq at host repack time.
    s = jnp.einsum('bqd,bkd->bqk', q, k,
                   preferred_element_type=jnp.float32)        # (bblk, T, T) f32
    s = s + mask_ref[...]                                     # resident additive mask

    # numerically-stable softmax, left UNnormalized until after the PV matmul
    m = jnp.max(s, axis=-1, keepdims=True)
    p = jnp.exp(s - m)                                        # (bblk, T, T) f32
    l = jnp.sum(p, axis=-1, keepdims=True)                    # (bblk, T, 1)
    # TODO(synk): attention dropout omitted (eval-mode / identity).

    oh = jnp.einsum('bqk,bkd->bqd', p.astype(jnp.bfloat16), v,
                    preferred_element_type=jnp.float32)       # (bblk, T, hs) f32
    oh = oh * pl.reciprocal(l, approx=True)                   # normalize: T*hs muls

    # ---- store this head into its lane slice of the resident accumulator ----
    start = h * hs
    if hs % 128 == 0:
        start = pl.multiple_of(start, 128)                    # aligned vector store
    acc_ref[:, pl.ds(start, hs)] = oh.reshape(M, hs).astype(acc_ref.dtype)

    # ---- one full-width output projection at the last head ------------------
    @pl.when(h == num_heads - 1)
    def _():
        out = jnp.dot(acc_ref[...], wp_ref[...],
                      preferred_element_type=jnp.float32)     # (M, C) f32
        out = out + bias_ref[...]                             # bias added once
        # TODO(synk): residual dropout omitted (eval-mode / identity).
        o_ref[...] = out.reshape(bblk, seq_len, n_embd).astype(o_ref.dtype)


def _pick_batch_block(B, T, *, target_rows=256, min_parallel_steps=2):
    """Largest divisor of B that (a) keeps >= min_parallel_steps iterations on
    the parallel batch-block axis (multi-TC chips shard this axis) and
    (b) gives bblk*T >= target_rows when possible."""
    max_bblk = B if B < min_parallel_steps else max(1, B // min_parallel_steps)
    bblk = min(max_bblk, max(1, -(-target_rows // T)))
    while B % bblk:
        bblk -= 1
    return bblk


def _vmem_limit_bytes(bblk, T, C, head_size, out_itemsize):
    """Derive a VMEM budget from the actual block sizes, clamped to 3/4 of the
    physical per-core VMEM (64 MiB on v7x, 128 MiB on v5e/v6e)."""
    est = (
        2 * bblk * T * C * 2                  # x block (bf16, double-buffered)
        + 2 * C * 3 * head_size * 2           # per-head QKV weights (bf16)
        + 2 * C * C * 2                       # output projection weights (bf16)
        + 2 * C * 4                           # bias (f32)
        + 2 * T * T * 4                       # additive causal mask (f32)
        + 2 * bblk * T * C * out_itemsize     # output block
        + bblk * T * C * 2                    # accumulator scratch (bf16)
        + 4 * bblk * T * T * 4                # scores / exp temporaries (rough)
        + 2 * bblk * T * 3 * head_size * 4    # qkv temporaries (rough)
    )
    try:
        phys = pltpu.get_tpu_info().vmem_capacity_bytes
    except Exception:
        phys = 64 * 1024 * 1024               # conservative: v7x per-TC VMEM
    return int(min(max(2 * est, 32 * 1024 * 1024), (phys * 3) // 4))


def multi_head_attention(x, wq, wk, wv, wp, bp, *, num_heads, head_size):
    """x: (B, T, C); wq/wk/wv: (C, H*hs) with H*hs == C; wp: (C, C); bp: (C,).

    Weights are stored (in, out) — i.e. already transposed vs. torch.nn.Linear —
    so the kernel computes x @ W directly.
    """
    B, T, C = x.shape
    assert num_heads * head_size == C
    assert T % 8 == 0 and C % 128 == 0, "demo assumes (8,128)-aligned T, C"

    # ---- host-side repack (pure layout + scale fold, done once) -------------
    scale = jnp.asarray(C ** (-0.5), dtype=wq.dtype)
    wq_s = wq * scale                                   # fold score scale into Wq
    wqkv_heads = jnp.stack(
        [jnp.concatenate([wq_s[:, h * head_size:(h + 1) * head_size],
                          wk[:, h * head_size:(h + 1) * head_size],
                          wv[:, h * head_size:(h + 1) * head_size]], axis=1)
         for h in range(num_heads)], axis=0).astype(jnp.bfloat16)   # (H, C, 3*hs)
    wp_bf = wp.astype(jnp.bfloat16)                     # (C, C), stays resident
    bias2 = bp.reshape(1, C).astype(jnp.float32)
    x_bf = x.astype(jnp.bfloat16)

    row = jnp.arange(T, dtype=jnp.int32)[:, None]
    col = jnp.arange(T, dtype=jnp.int32)[None, :]
    mask = jnp.where(col > row, -1e30, 0.0).astype(jnp.float32)     # (T, T)

    bblk = _pick_batch_block(B, T)                      # M = bblk*T rows per matmul
    R = B // bblk

    kernel = functools.partial(
        mha_kernel, num_heads=num_heads, head_size=head_size,
        seq_len=T, n_embd=C, bblk=bblk)

    return pl.pallas_call(
        kernel,
        out_shape=jax.ShapeDtypeStruct((B, T, C), x.dtype),
        grid_spec=pltpu.PrefetchScalarGridSpec(
            num_scalar_prefetch=0,
            grid=(R, num_heads),                        # head axis innermost
            in_specs=[
                # x: one batch block, constant across heads -> stays resident
                pl.BlockSpec((bblk, T, C), lambda r, h: (r, 0, 0)),
                # fused per-head QKV weight slice (bf16)
                pl.BlockSpec((None, C, 3 * head_size), lambda r, h: (h, 0, 0)),
                # full output projection, constant index -> resident
                pl.BlockSpec((C, C), lambda r, h: (0, 0)),
                # bias (tiny, constant)
                pl.BlockSpec((1, C), lambda r, h: (0, 0)),
                # additive causal mask, constant -> resident
                pl.BlockSpec((T, T), lambda r, h: (0, 0)),
            ],
            out_specs=pl.BlockSpec((bblk, T, C), lambda r, h: (r, 0, 0)),
            scratch_shapes=[pltpu.VMEM((bblk * T, C), jnp.bfloat16)],
        ),
        compiler_params=pltpu.CompilerParams(
            dimension_semantics=("parallel", "arbitrary"),
            vmem_limit_bytes=_vmem_limit_bytes(bblk, T, C, head_size,
                                               x.dtype.itemsize)),
    )(x_bf, wqkv_heads, wp_bf, bias2, mask)


def reference_mha(x, wq, wk, wv, wp, bp, *, num_heads, head_size):
    """Plain-JAX f32 reference mirroring the PyTorch forward (eval mode)."""
    B, T, C = x.shape
    q = x @ wq
    k = x @ wk
    v = x @ wv
    scale = C ** (-0.5)                      # C**-0.5 exactly as in the module
    causal = jnp.tril(jnp.ones((T, T), dtype=bool))
    outs = []
    for h in range(num_heads):
        sl = slice(h * head_size, (h + 1) * head_size)
        wei = (q[..., sl] @ jnp.swapaxes(k[..., sl], -2, -1)) * scale
        wei = jnp.where(causal, wei, -jnp.inf)
        wei = jax.nn.softmax(wei, axis=-1)
        outs.append(wei @ v[..., sl])
    cat = jnp.concatenate(outs, axis=-1)
    return cat @ wp + bp


if __name__ == "__main__":
    # Shapes implied by the module's config: n_embd = 512; pick 4 heads of 128.
    B, T = 2, 64                      # batch, sequence length (block_size >= T)
    n_embd = 512                      # embedding dim C
    num_heads = 4
    head_size = n_embd // num_heads   # 128 -> lane-aligned per-head slices

    key = jax.random.PRNGKey(0)
    kx, kq, kk, kv, kp, kb = jax.random.split(key, 6)

    x = jax.random.normal(kx, (B, T, n_embd), dtype=jnp.float32)

    # Deterministic parameter init. nn.Linear applies x @ W.T; we store the
    # already-transposed (in, out) matrices so the kernel does x @ W directly.
    init_scale = 0.02
    wq = init_scale * jax.random.normal(kq, (n_embd, num_heads * head_size), jnp.float32)
    wk = init_scale * jax.random.normal(kk, (n_embd, num_heads * head_size), jnp.float32)
    wv = init_scale * jax.random.normal(kv, (n_embd, num_heads * head_size), jnp.float32)
    wp = init_scale * jax.random.normal(kp, (n_embd, n_embd), jnp.float32)
    bp = init_scale * jax.random.normal(kb, (n_embd,), jnp.float32)

    out = multi_head_attention(x, wq, wk, wv, wp, bp,
                               num_heads=num_heads, head_size=head_size)
    out = jax.block_until_ready(out)

    ref = reference_mha(x, wq, wk, wv, wp, bp,
                        num_heads=num_heads, head_size=head_size)
    assert out.shape == (B, T, n_embd)
    # Relaxed tolerance: bf16 MXU operands + approx (EUP) reciprocal in softmax.
    assert jnp.allclose(out, ref, atol=1e-2, rtol=1e-2), "mismatch vs reference"

    print("KERNEL_OK")
</pallas_src>

<mosaic_0001>
module attributes {stable_mosaic.version = 11 : i64} {
  func.func @mha_kernel(%arg0: i32, %arg1: i32, %arg2: memref<1x64x512xbf16, #tpu.memory_space<vmem>>, %arg3: memref<1x512x384xbf16, #tpu.memory_space<vmem>>, %arg4: memref<512x512xbf16, #tpu.memory_space<vmem>>, %arg5: memref<1x512xf32, #tpu.memory_space<vmem>>, %arg6: memref<64x64xf32, #tpu.memory_space<vmem>>, %arg7: memref<1x64x512xf32, #tpu.memory_space<vmem>>, %arg8: memref<64x512xbf16, #tpu.memory_space<vmem>>) attributes {dimension_semantics = [#tpu.dimension_semantics<parallel>, #tpu.dimension_semantics<arbitrary>], iteration_bounds = array<i64: 2, 4>, scalar_prefetch = 0 : i64, scratch_operands = 1 : i64, tpu.core_type = #tpu.core_type<tc>, window_params = [{transform_indices = @transform_0, window_bounds = array<i64: 1, 64, 512>}, {transform_indices = @transform_1, window_bounds = array<i64: 1, 512, 384>}, {pipeline_mode = #tpu.pipeline_mode<synchronous>, transform_indices = @transform_2, window_bounds = array<i64: 512, 512>}, {pipeline_mode = #tpu.pipeline_mode<synchronous>, transform_indices = @transform_3, window_bounds = array<i64: 1, 512>}, {pipeline_mode = #tpu.pipeline_mode<synchronous>, transform_indices = @transform_4, window_bounds = array<i64: 64, 64>}, {transform_indices = @transform_5, window_bounds = array<i64: 1, 64, 512>}]} {
    %c0 = arith.constant 0 : index
    %c0_0 = arith.constant 0 : index
    %c0_1 = arith.constant 0 : index
    %0 = vector.load %arg2[%c0, %c0_0, %c0_1] : memref<1x64x512xbf16, #tpu.memory_space<vmem>>, vector<1x64x512xbf16>
    %1 = vector.shape_cast %0 : vector<1x64x512xbf16> to vector<64x512xbf16>
    %c0_2 = arith.constant 0 : index
    %c0_3 = arith.constant 0 : index
    %c0_4 = arith.constant 0 : index
    %2 = vector.load %arg3[%c0_2, %c0_3, %c0_4] : memref<1x512x384xbf16, #tpu.memory_space<vmem>>, vector<1x512x384xbf16>
    %3 = vector.shape_cast %2 : vector<1x512x384xbf16> to vector<512x384xbf16>
    %cst = arith.constant dense<0.000000e+00> : vector<64x384xf32>
    %4 = tpu.matmul %1, %3, %cst {dimension_numbers = #tpu.dot_dimension_numbers<[1], [0], [0], [1], [0, 0, 1, 1], [], []>} : vector<64x512xbf16>, vector<512x384xbf16>, vector<64x384xf32> -> vector<64x384xf32>
    %5 = arith.truncf %4 : vector<64x384xf32> to vector<64x384xbf16>
    %6 = vector.extract_strided_slice %5 {offsets = [0, 0], sizes = [64, 128], strides = [1, 1]} : vector<64x384xbf16> to vector<64x128xbf16>
    %7 = vector.shape_cast %6 : vector<64x128xbf16> to vector<1x64x128xbf16>
    %8 = vector.extract_strided_slice %5 {offsets = [0, 128], sizes = [64, 128], strides = [1, 1]} : vector<64x384xbf16> to vector<64x128xbf16>
    %9 = vector.shape_cast %8 : vector<64x128xbf16> to vector<1x64x128xbf16>
    %10 = vector.extract_strided_slice %5 {offsets = [0, 256], sizes = [64, 128], strides = [1, 1]} : vector<64x384xbf16> to vector<64x128xbf16>
    %11 = vector.shape_cast %10 : vector<64x128xbf16> to vector<1x64x128xbf16>
    "tpu.trace_start"() <{level = 10 : i32, message = "bqd,bkd->bqk"}> : () -> ()
    %cst_5 = arith.constant dense<0.000000e+00> : vector<1x64x64xf32>
    %12 = tpu.matmul %7, %9, %cst_5 {dimension_numbers = #tpu.dot_dimension_numbers<[2], [2], [1], [1], [0, 0, 0, 1, 1, 1], [0], [0]>} : vector<1x64x128xbf16>, vector<1x64x128xbf16>, vector<1x64x64xf32> -> vector<1x64x64xf32>
    "tpu.trace_stop"() : () -> ()
    %c0_6 = arith.constant 0 : index
    %c0_7 = arith.constant 0 : index
    %13 = vector.load %arg6[%c0_6, %c0_7] : memref<64x64xf32, #tpu.memory_space<vmem>>, vector<64x64xf32>
    %14 = vector.shape_cast %13 : vector<64x64xf32> to vector<1x64x64xf32>
    %15 = arith.addf %12, %14 : vector<1x64x64xf32>
    %cst_8 = arith.constant dense<0xFF800000> : vector<1x64xf32>
    %16 = vector.multi_reduction <maximumf>, %15, %cst_8 [2] : vector<1x64x64xf32> to vector<1x64xf32>
    %17 = vector.shape_cast %16 : vector<1x64xf32> to vector<1x64x1xf32>
    %18 = vector.broadcast %17 : vector<1x64x1xf32> to vector<1x64x64xf32>
    %19 = arith.subf %15, %18 : vector<1x64x64xf32>
    %20 = math.exp %19 : vector<1x64x64xf32>
    %cst_9 = arith.constant dense<0.000000e+00> : vector<1x64xf32>
    %21 = vector.multi_reduction <add>, %20, %cst_9 [2] : vector<1x64x64xf32> to vector<1x64xf32>
    %22 = vector.shape_cast %21 : vector<1x64xf32> to vector<1x64x1xf32>
    %23 = arith.truncf %20 : vector<1x64x64xf32> to vector<1x64x64xbf16>
    "tpu.trace_start"() <{level = 10 : i32, message = "bqk,bkd->bqd"}> : () -> ()
    %cst_10 = arith.constant dense<0.000000e+00> : vector<1x64x128xf32>
    %24 = tpu.matmul %23, %11, %cst_10 {dimension_numbers = #tpu.dot_dimension_numbers<[2], [1], [1], [2], [0, 0, 0, 1, 1, 2], [0], [0]>} : vector<1x64x64xbf16>, vector<1x64x128xbf16>, vector<1x64x128xf32> -> vector<1x64x128xf32>
    "tpu.trace_stop"() : () -> ()
    %25 = tpu.reciprocal %22 {approx = true} : vector<1x64x1xf32> -> vector<1x64x1xf32>
    %26 = vector.broadcast %25 : vector<1x64x1xf32> to vector<1x64x128xf32>
    %27 = arith.mulf %24, %26 : vector<1x64x128xf32>
    %c128_i32 = arith.constant 128 : i32
    %28 = arith.muli %arg1, %c128_i32 : i32
    %29 = tpu.assume_multiple %28, 128 : i32
    %30 = vector.shape_cast %27 : vector<1x64x128xf32> to vector<64x128xf32>
    %31 = arith.truncf %30 : vector<64x128xf32> to vector<64x128xbf16>
    %c0_11 = arith.constant 0 : index
    %32 = arith.index_cast %29 : i32 to index
    %33 = vector.load %arg8[%c0_11, %32] : memref<64x512xbf16, #tpu.memory_space<vmem>>, vector<64x128xbf16>
    tpu.vector_store %arg8[%c0_11, %32], %31 {strides = array<i32>} : memref<64x512xbf16, #tpu.memory_space<vmem>>, vector<64x128xbf16>,
    %c3_i32 = arith.constant 3 : i32
    %34 = arith.cmpi eq, %arg1, %c3_i32 : i32
    %35 = arith.extui %34 : i1 to i32
    %c0_i32 = arith.constant 0 : i32
    %36 = arith.cmpi ne, %35, %c0_i32 : i32
    scf.if %36 {
      %c0_12 = arith.constant 0 : index
      %c0_13 = arith.constant 0 : index
      %37 = vector.load %arg8[%c0_12, %c0_13] : memref<64x512xbf16, #tpu.memory_space<vmem>>, vector<64x512xbf16>
      %c0_14 = arith.constant 0 : index
      %c0_15 = arith.constant 0 : index
      %38 = vector.load %arg4[%c0_14, %c0_15] : memref<512x512xbf16, #tpu.memory_space<vmem>>, vector<512x512xbf16>
      %cst_16 = arith.constant dense<0.000000e+00> : vector<64x512xf32>
      %39 = tpu.matmul %37, %38, %cst_16 {dimension_numbers = #tpu.dot_dimension_numbers<[1], [0], [0], [1], [0, 0, 1, 1], [], []>} : vector<64x512xbf16>, vector<512x512xbf16>, vector<64x512xf32> -> vector<64x512xf32>
      %c0_17 = arith.constant 0 : index
      %c0_18 = arith.constant 0 : index
      %40 = vector.load %arg5[%c0_17, %c0_18] : memref<1x512xf32, #tpu.memory_space<vmem>>, vector<1x512xf32>
      %41 = vector.broadcast %40 : vector<1x512xf32> to vector<64x512xf32>
      %42 = arith.addf %39, %41 : vector<64x512xf32>
      %43 = vector.shape_cast %42 : vector<64x512xf32> to vector<1x64x512xf32>
      %c0_19 = arith.constant 0 : index
      %c0_20 = arith.constant 0 : index
      %c0_21 = arith.constant 0 : index
      %44 = vector.load %arg7[%c0_19, %c0_20, %c0_21] : memref<1x64x512xf32, #tpu.memory_space<vmem>>, vector<1x64x512xf32>
      tpu.vector_store %arg7[%c0_19, %c0_20, %c0_21], %43 {strides = array<i32>} : memref<1x64x512xf32, #tpu.memory_space<vmem>>, vector<1x64x512xf32>,
    } else {
    }
    return
  }
  func.func @transform_0(%arg0: i32, %arg1: i32) -> (i32, i32, i32) {
    %c0_i32 = arith.constant 0 : i32
    %c0_i32_0 = arith.constant 0 : i32
    %c0_i32_1 = arith.constant 0 : i32
    return %arg0, %c0_i32, %c0_i32_0 : i32, i32, i32
  }
  func.func @transform_1(%arg0: i32, %arg1: i32) -> (i32, i32, i32) {
    %c0_i32 = arith.constant 0 : i32
    %c0_i32_0 = arith.constant 0 : i32
    %c0_i32_1 = arith.constant 0 : i32
    return %arg1, %c0_i32, %c0_i32_0 : i32, i32, i32
  }
  func.func @transform_2(%arg0: i32, %arg1: i32) -> (i32, i32) {
    %c0_i32 = arith.constant 0 : i32
    %c0_i32_0 = arith.constant 0 : i32
    %c0_i32_1 = arith.constant 0 : i32
    return %c0_i32, %c0_i32_0 : i32, i32
  }
  func.func @transform_3(%arg0: i32, %arg1: i32) -> (i32, i32) {
    %c0_i32 = arith.constant 0 : i32
    %c0_i32_0 = arith.constant 0 : i32
    %c0_i32_1 = arith.constant 0 : i32
    return %c0_i32, %c0_i32_0 : i32, i32
  }
  func.func @transform_4(%arg0: i32, %arg1: i32) -> (i32, i32) {
    %c0_i32 = arith.constant 0 : i32
    %c0_i32_0 = arith.constant 0 : i32
    %c0_i32_1 = arith.constant 0 : i32
    return %c0_i32, %c0_i32_0 : i32, i32
  }
  func.func @transform_5(%arg0: i32, %arg1: i32) -> (i32, i32, i32) {
    %c0_i32 = arith.constant 0 : i32
    %c0_i32_0 = arith.constant 0 : i32
    %c0_i32_1 = arith.constant 0 : i32
    return %arg0, %c0_i32, %c0_i32_0 : i32, i32, i32
  }
}

</mosaic_0001>

<llo_original>
// kernel: tpu_custom_call.1
$region0: #{tpu_custom_call.1}
  #allocation0 [shape = 'u32[]', space=smem, size = 0x4, offset = 0x4, fixed_abs, tag = 'smem constant byte address 0x4 - core index']
  #allocation1 [shape = 'u32[144,128]{1,0:T(1,128)}', space=vmem, size = 0x12000, scoped, tag = 'internal scratch']
  #allocation2 [shape = 'bf16[64,512]{1,0:T(16,128)(2,1)}', space=vmem, size = 0x10000, scoped, tag = 'scratch operand']
  %s0 = inlined_call_operand.hbm [shape: bf16[2,64,512], index: 0, kind: input, shape index: {}]
  %s1 = inlined_call_operand.hbm [shape: bf16[4,512,384], index: 1, kind: input, shape index: {}]
  %s2 = inlined_call_operand.hbm [shape: bf16[512,512], index: 2, kind: input, shape index: {}]
  %s3 = inlined_call_operand.hbm [shape: f32[1,512], index: 3, kind: input, shape index: {}]
  %s4 = inlined_call_operand.hbm [shape: f32[64,64], index: 4, kind: input, shape index: {}]
  %s5 = inlined_call_operand.hbm [shape: f32[2,64,512], index: 5, kind: output, shape index: {}]
  %s6 = sld [smem:[#allocation0]]
  $region77: #{tpu_custom_call.1} parent=0
    _
  %s8 = ssub.s32 1, %s6
  %s9 = scalar_select 0, %s8, %s6
  $region1: #{tpu_custom_call.1} parent=0
    #allocation3 [shape = 'u8[131072]{0}', space=vmem, size = 0x20000, scoped, tag = 'input window, operand 0']
    #allocation4 [shape = 's32[2]{0}', space=sflag, size = 0x8, scoped, tag = 'scoped memory for tpu_custom_call.1']
    #allocation5 [shape = 's32[2]{0}', space=sflag, size = 0x8, scoped, tag = 'scoped memory for tpu_custom_call.1']
    #allocation6 [shape = 'u8[786432]{0}', space=vmem, size = 0xc0000, scoped, tag = 'input window, operand 1']
    #allocation7 [shape = 's32[2]{0}', space=sflag, size = 0x8, scoped, tag = 'scoped memory for tpu_custom_call.1']
    #allocation8 [shape = 'u8[524288]{0}', space=vmem, size = 0x80000, scoped, tag = 'input window, operand 2, single buffered']
    #allocation9 [shape = 'u8[2048]{0}', space=vmem, size = 0x800, scoped, tag = 'input window, operand 3, single buffered']
    #allocation10 [shape = 's32[1]{0}', space=sflag, size = 0x4, scoped, tag = 'scoped memory for tpu_custom_call.1']
    #allocation11 [shape = 'u8[32768]{0}', space=vmem, size = 0x8000, scoped, tag = 'input window, operand 4, single buffered']
    #allocation12 [shape = 'u8[262144]{0}', space=vmem, size = 0x40000, scoped, tag = 'output window, operand 0']
    %10 = vsyncpa [#allocation4], 0
    %s11 = scalar_lea.sflag [#allocation4], 1
    %12 = vsyncpa %s11, 0
    %13 = vsyncpa [#allocation7], 0
    %s14 = scalar_lea.sflag [#allocation7], 1
    %15 = vsyncpa %s14, 0
    %16 = vsyncpa [#allocation10], 0
    %17 = vsyncpa [#allocation5], 0
    %s18 = scalar_lea.sflag [#allocation5], 1
    %19 = vsyncpa %s18, 0
    loop: start=0, step=1, limit=10
    $region2: #{tpu_custom_call.1} parent=1 // loop_pre_header
      _
    $region3: #{tpu_custom_call.1} parent=1 // loop_header
      %s21 = sphi 0, %s25
      %p22 = scmp.ge.s32.totalorder %s21, 10
      %s28 = sphi 0, %s40
      %s29 = sphi 0, %s36
      %s30 = sphi 0, %s28
      %s31 = sphi 0, %s29
      %s32 = sphi 0, %s30
      %s33 = sphi 0, %s31
      %s43 = sphi 0, %s45
      %s46 = sphi 0, %s43
      %s47 = sphi 0, %s46
      %s63 = sphi 0, %s47
      %s69 = sphi 0, %s71
      %s72 = sphi 0, %s69
      %s73 = sphi 0, %s72
      %s89 = sphi 0, %s73
      %s93 = sphi 0, %s93
      %s95 = sphi 0, %s93
      %s96 = sphi 0, %s95
      %s110 = sphi 0, %s96
      %s114 = sphi 0, %s114
      %s116 = sphi 0, %s114
      %s117 = sphi 0, %s116
      %s131 = sphi 0, %s117
      %s135 = sphi 0, %s135
      %s137 = sphi 0, %s135
      %s138 = sphi 0, %s137
      %s152 = sphi 0, %s138
      %s158 = sphi 0, %s160
      %s161 = sphi 0, %s158
      %s162 = sphi 0, %s161
      %s178 = sphi 0, %s162
    $region4: #{tpu_custom_call.1} parent=1 // loop_header_branch
      %24 = sbr.rel (%p22) target = $region8
    $region5: #{tpu_custom_call.1} parent=1 // loop_body
      %s26 = ssub.s32 %s21, 1
      %s27 = ssub.s32 %s21, 2
      %s34 = sadd.s32 1, %s29
      %p35 = scmp.ge.s32.totalorder %s34, 4
      %s36 = scalar_select %p35, 0, %s34
      %s37 = sadd.s32 1, %s28
      %s38 = scalar_select %p35, %s37, %s28
      %p39 = scmp.ge.s32.totalorder %s38, 2
      %s40 = scalar_select %p39, 0, %s38
      %s41 = ssub.s32 %s28, %s40
      %p42 = scmp.eq.s32.totalorder %s41, 0
      %s44 = sadd.s32 %s43, 1
      %s45 = scalar_select %p42, %s43, %s44
      %p48 = pneg %p42
      %p49 = scmp.eq.s32.totalorder %s21, 7
      %p50 = por %p48, %p49
      %p51 = scmp.ne.s32.totalorder %s43, %s46
      %p52 = scmp.eq.s32.totalorder %s21, 0
      %p53 = por %p51, %p52
      %p54 = scmp.ne.s32.totalorder %s43, %s46
      %p55 = scmp.eq.s32.totalorder %s26, 7
      %p56 = por %p54, %p55
      %p57 = scmp.ne.s32.totalorder %s46, %s47
      %p58 = scmp.eq.s32.totalorder %s26, 0
      %p59 = por %p57, %p58
      %p60 = scmp.ne.s32.totalorder %s46, %s47
      %p61 = scmp.eq.s32.totalorder %s27, 7
      %p62 = por %p60, %p61
      %p64 = scmp.ne.s32.totalorder %s47, %s63
      %p65 = scmp.eq.s32.totalorder %s27, 0
      %p66 = por %p64, %p65
      %s67 = ssub.s32 %s29, %s36
      %p68 = scmp.eq.s32.totalorder %s67, 0
      %s70 = sadd.s32 %s69, 1
      %s71 = scalar_select %p68, %s69, %s70
      %p74 = pneg %p68
      %p75 = scmp.eq.s32.totalorder %s21, 7
      %p76 = por %p74, %p75
      %p77 = scmp.ne.s32.totalorder %s69, %s72
      %p78 = scmp.eq.s32.totalorder %s21, 0
      %p79 = por %p77, %p78
      %p80 = scmp.ne.s32.totalorder %s69, %s72
      %p81 = scmp.eq.s32.totalorder %s26, 7
      %p82 = por %p80, %p81
      %p83 = scmp.ne.s32.totalorder %s72, %s73
      %p84 = scmp.eq.s32.totalorder %s26, 0
      %p85 = por %p83, %p84
      %p86 = scmp.ne.s32.totalorder %s72, %s73
      %p87 = scmp.eq.s32.totalorder %s27, 7
      %p88 = por %p86, %p87
      %p90 = scmp.ne.s32.totalorder %s73, %s89
      %p91 = scmp.eq.s32.totalorder %s27, 0
      %p92 = por %p90, %p91
      %s94 = sadd.s32 %s93, 1
      %p97 = scmp.eq.s32.totalorder %s21, 7
      %p98 = scmp.ne.s32.totalorder %s93, %s95
      %p99 = scmp.eq.s32.totalorder %s21, 0
      %p100 = por %p98, %p99
      %p101 = scmp.ne.s32.totalorder %s93, %s95
      %p102 = scmp.eq.s32.totalorder %s26, 7
      %p103 = por %p101, %p102
      %p104 = scmp.ne.s32.totalorder %s95, %s96
      %p105 = scmp.eq.s32.totalorder %s26, 0
      %p106 = por %p104, %p105
      %p107 = scmp.ne.s32.totalorder %s95, %s96
      %p108 = scmp.eq.s32.totalorder %s27, 7
      %p109 = por %p107, %p108
      %p111 = scmp.ne.s32.totalorder %s96, %s110
      %p112 = scmp.eq.s32.totalorder %s27, 0
      %p113 = por %p111, %p112
      %s115 = sadd.s32 %s114, 1
      %p118 = scmp.eq.s32.totalorder %s21, 7
      %p119 = scmp.ne.s32.totalorder %s114, %s116
      %p120 = scmp.eq.s32.totalorder %s21, 0
      %p121 = por %p119, %p120
      %p122 = scmp.ne.s32.totalorder %s114, %s116
      %p123 = scmp.eq.s32.totalorder %s26, 7
      %p124 = por %p122, %p123
      %p125 = scmp.ne.s32.totalorder %s116, %s117
      %p126 = scmp.eq.s32.totalorder %s26, 0
      %p127 = por %p125, %p126
      %p128 = scmp.ne.s32.totalorder %s116, %s117
      %p129 = scmp.eq.s32.totalorder %s27, 7
      %p130 = por %p128, %p129
      %p132 = scmp.ne.s32.totalorder %s117, %s131
      %p133 = scmp.eq.s32.totalorder %s27, 0
      %p134 = por %p132, %p133
      %s136 = sadd.s32 %s135, 1
      %p139 = scmp.eq.s32.totalorder %s21, 7
      %p140 = scmp.ne.s32.totalorder %s135, %s137
      %p141 = scmp.eq.s32.totalorder %s21, 0
      %p142 = por %p140, %p141
      %p143 = scmp.ne.s32.totalorder %s135, %s137
      %p144 = scmp.eq.s32.totalorder %s26, 7
      %p145 = por %p143, %p144
      %p146 = scmp.ne.s32.totalorder %s137, %s138
      %p147 = scmp.eq.s32.totalorder %s26, 0
      %p148 = por %p146, %p147
      %p149 = scmp.ne.s32.totalorder %s137, %s138
      %p150 = scmp.eq.s32.totalorder %s27, 7
      %p151 = por %p149, %p150
      %p153 = scmp.ne.s32.totalorder %s138, %s152
      %p154 = scmp.eq.s32.totalorder %s27, 0
      %p155 = por %p153, %p154
      %s156 = ssub.s32 %s28, %s40
      %p157 = scmp.eq.s32.totalorder %s156, 0
      %s159 = sadd.s32 %s158, 1
      %s160 = scalar_select %p157, %s158, %s159
      %p163 = pneg %p157
      %p164 = scmp.eq.s32.totalorder %s21, 7
      %p165 = por %p163, %p164
      %p166 = scmp.ne.s32.totalorder %s158, %s161
      %p167 = scmp.eq.s32.totalorder %s21, 0
      %p168 = por %p166, %p167
      %p169 = scmp.ne.s32.totalorder %s158, %s161
      %p170 = scmp.eq.s32.totalorder %s26, 7
      %p171 = por %p169, %p170
      %p172 = scmp.ne.s32.totalorder %s161, %s162
      %p173 = scmp.eq.s32.totalorder %s26, 0
      %p174 = por %p172, %p173
      %p175 = scmp.ne.s32.totalorder %s161, %s162
      %p176 = scmp.eq.s32.totalorder %s27, 7
      %p177 = por %p175, %p176
      %p179 = scmp.ne.s32.totalorder %s162, %s178
      %p180 = scmp.eq.s32.totalorder %s27, 0
      %p181 = por %p179, %p180
      %p182 = scmp.le.s32.totalorder 1, %s21
      %p183 = scmp.lt.s32.totalorder %s21, 9
      %p184 = pnand %p182, %p183
      %p185 = pneg %p184
      // Predicated region
      $region9: #{tpu_custom_call.1} parent=5 // pred_check
        _
      $region10: #{tpu_custom_call.1} parent=5 // pred_check_branch
        %187 = sbr.rel (%p184) target = $region12
      $region11: #{tpu_custom_call.1} parent=5 // pred_region
        %s188 = ssub.s32 %s21, 1
        // Predicated region
        $region13: #{tpu_custom_call.1} parent=11 // pred_check
          %p189 = pneg %p106
        $region14: #{tpu_custom_call.1} parent=11 // pred_check_branch
          %191 = sbr.rel (%p189) target = $region16
        $region15: #{tpu_custom_call.1} parent=11 // pred_region
          %s193 = ssub.s32 16384, 16384
          %194 = vsyncadd [#allocation7], %s193
          %s195 = sshll.u32 [#allocation8], 4
          %s196 = int_to_ptr.vmem [resolvable:$true] %s195
          %201 = dma.hbm_to_vmem [thread:$0]  %s2, 16384, %s196, [#allocation7], 256, 256, 16
        $region16: #{tpu_custom_call.1} parent=11 // pred_fallthru
          _
        // Predicated region
        $region17: #{tpu_custom_call.1} parent=11 // pred_check
          %p202 = pneg %p127
        $region18: #{tpu_custom_call.1} parent=11 // pred_check_branch
          %204 = sbr.rel (%p202) target = $region20
        $region19: #{tpu_custom_call.1} parent=11 // pred_region
          %s206 = ssub.s32 64, 64
          %207 = vsyncadd [#allocation10], %s206
          %s209 = sshll.u32 [#allocation9], 4
          %s210 = int_to_ptr.vmem [resolvable:$true] %s209
          %212 = dma.hbm_to_vmem [thread:$0]  %s3, 64, %s210, [#allocation10]
        $region20: #{tpu_custom_call.1} parent=11 // pred_fallthru
          _
        // Predicated region
        $region21: #{tpu_custom_call.1} parent=11 // pred_check
          %p213 = pneg %p148
        $region22: #{tpu_custom_call.1} parent=11 // pred_check_branch
          %215 = sbr.rel (%p213) target = $region24
        $region23: #{tpu_custom_call.1} parent=11 // pred_region
          %s217 = ssub.s32 1024, 1024
          %218 = vsyncadd [#allocation10], %s217
          %s219 = sshll.u32 [#allocation11], 4
          %s220 = int_to_ptr.vmem [resolvable:$true] %s219
          %225 = dma.hbm_to_vmem [thread:$0]  %s4, 1024, %s220, [#allocation10], 128, 128, 8
        $region24: #{tpu_custom_call.1} parent=11 // pred_fallthru
          _
      $region12: #{tpu_custom_call.1} parent=5 // pred_fallthru
        _
      %p226 = scmp.lt.s32.totalorder %s21, 8
      // Predicated region
      $region25: #{tpu_custom_call.1} parent=5 // pred_check
        %p227 = pneg %p226
      $region26: #{tpu_custom_call.1} parent=5 // pred_check_branch
        %229 = sbr.rel (%p227) target = $region28
      $region27: #{tpu_custom_call.1} parent=5 // pred_region
        // Predicated region
        $region29: #{tpu_custom_call.1} parent=27 // pred_check
          %p230 = pneg %p53
        $region30: #{tpu_custom_call.1} parent=27 // pred_check_branch
          %232 = sbr.rel (%p230) target = $region32
        $region31: #{tpu_custom_call.1} parent=27 // pred_region
          %s233 = sand.u32 %s43, 1
          %s234 = scalar_lea.sflag [#allocation4], %s233
          %s235 = sand.u32 %s43, 1
          %s236 = smul.addr %s235, 128
          %s237 = scalar_lea.vmem [#allocation3], %s236
          %s239 = ssub.s32 2048, 2048
          %240 = vsyncadd %s234, %s239
          %s241 = smul.addr %s28, 32
          %s242 = smul.addr %s241, 64
          %s243 = scalar_lea.hbm %s0, %s242
          %s244 = sshll.u32 %s237, 4
          %s245 = int_to_ptr.vmem [resolvable:$true] %s244
          %250 = dma.hbm_to_vmem [thread:$0]  %s243, 2048, %s245, %s234, 256, 256, 16
        $region32: #{tpu_custom_call.1} parent=27 // pred_fallthru
          _
        // Predicated region
        $region33: #{tpu_custom_call.1} parent=27 // pred_check
          %p251 = pneg %p79
        $region34: #{tpu_custom_call.1} parent=27 // pred_check_branch
          %253 = sbr.rel (%p251) target = $region36
        $region35: #{tpu_custom_call.1} parent=27 // pred_region
          %s254 = sand.u32 %s21, 1
          %s255 = scalar_lea.sflag [#allocation7], %s254
          %s256 = sand.u32 %s69, 1
          %s257 = smul.addr %s256, 768
          %s258 = scalar_lea.vmem [#allocation6], %s257
          %s260 = ssub.s32 12288, 12288
          %261 = vsyncadd %s255, %s260
          %s262 = smul.addr %s29, 192
          %s263 = smul.addr %s262, 64
          %s264 = scalar_lea.hbm %s1, %s263
          %s265 = sshll.u32 %s258, 4
          %s266 = int_to_ptr.vmem [resolvable:$true] %s265
          %271 = dma.hbm_to_vmem [thread:$0]  %s264, 12288, %s266, %s255, 192, 192, 12
        $region36: #{tpu_custom_call.1} parent=27 // pred_fallthru
          _
      $region28: #{tpu_custom_call.1} parent=5 // pred_fallthru
        _
      %p272 = scmp.le.s32.totalorder 1, %s21
      %p273 = scmp.lt.s32.totalorder %s21, 9
      %p274 = pnand %p272, %p273
      %p275 = pneg %p274
      // Predicated region
      $region37: #{tpu_custom_call.1} parent=5 // pred_check
        _
      $region38: #{tpu_custom_call.1} parent=5 // pred_check_branch
        %277 = sbr.rel (%p274) target = $region40
      $region39: #{tpu_custom_call.1} parent=5 // pred_region
        %s278 = ssub.s32 %s21, 1
        %s279 = sand.u32 %s46, 1
        %s280 = scalar_lea.sflag [#allocation4], %s279
        %s281 = sand.u32 %s46, 1
        %s282 = smul.addr %s281, 128
        %s283 = scalar_lea.vmem [#allocation3], %s282
        // Predicated region
        $region41: #{tpu_custom_call.1} parent=39 // pred_check
          %p284 = pneg %p59
        $region42: #{tpu_custom_call.1} parent=39 // pred_check_branch
          %286 = sbr.rel (%p284) target = $region44
        $region43: #{tpu_custom_call.1} parent=39 // pred_region
          %287 = dma.done %s280, 2048
        $region44: #{tpu_custom_call.1} parent=39 // pred_fallthru
          _
        %s288 = sand.u32 %s26, 1
        %s289 = scalar_lea.sflag [#allocation7], %s288
        %s290 = sand.u32 %s72, 1
        %s291 = smul.addr %s290, 768
        %s292 = scalar_lea.vmem [#allocation6], %s291
        // Predicated region
        $region45: #{tpu_custom_call.1} parent=39 // pred_check
          %p293 = pneg %p85
        $region46: #{tpu_custom_call.1} parent=39 // pred_check_branch
          %295 = sbr.rel (%p293) target = $region48
        $region47: #{tpu_custom_call.1} parent=39 // pred_region
          %296 = dma.done %s289, 12288
        $region48: #{tpu_custom_call.1} parent=39 // pred_fallthru
          _
        // Predicated region
        $region49: #{tpu_custom_call.1} parent=39 // pred_check
          %p297 = pneg %p106
        $region50: #{tpu_custom_call.1} parent=39 // pred_check_branch
          %299 = sbr.rel (%p297) target = $region52
        $region51: #{tpu_custom_call.1} parent=39 // pred_region
          %300 = dma.done [#allocation7], 16384
        $region52: #{tpu_custom_call.1} parent=39 // pred_fallthru
          _
        // Predicated region
        $region53: #{tpu_custom_call.1} parent=39 // pred_check
          %p301 = pneg %p127
        $region54: #{tpu_custom_call.1} parent=39 // pred_check_branch
          %303 = sbr.rel (%p301) target = $region56
        $region55: #{tpu_custom_call.1} parent=39 // pred_region
          %304 = dma.done [#allocation10], 64
        $region56: #{tpu_custom_call.1} parent=39 // pred_fallthru
          _
        // Predicated region
        $region57: #{tpu_custom_call.1} parent=39 // pred_check
          %p305 = pneg %p148
        $region58: #{tpu_custom_call.1} parent=39 // pred_check_branch
          %307 = sbr.rel (%p305) target = $region60
        $region59: #{tpu_custom_call.1} parent=39 // pred_region
          %308 = dma.done [#allocation10], 1024
        $region60: #{tpu_custom_call.1} parent=39 // pred_fallthru
          _
        %s309 = sand.u32 %s46, 1
        %s310 = scalar_lea.sflag [#allocation4], %s309
        %s311 = sand.u32 %s46, 1
        %s312 = smul.addr %s311, 128
        %s313 = scalar_lea.vmem [#allocation3], %s312
        %p314 = pneg %p59
        %p315 = pneg %p56
        %s316 = sand.u32 %s26, 1
        %s317 = scalar_lea.sflag [#allocation7], %s316
        %s318 = sand.u32 %s72, 1
        %s319 = smul.addr %s318, 768
        %s320 = scalar_lea.vmem [#allocation6], %s319
        %p321 = pneg %p85
        %p322 = pneg %p82
        %p323 = pneg %p106
        %p324 = pneg %p103
        %p325 = pneg %p127
        %p326 = pneg %p124
        %p327 = pneg %p148
        %p328 = pneg %p145
        %p329 = pneg %p174
        %p330 = pneg %p171
        %s331 = sand.u32 %s161, 1
        %s332 = scalar_lea.sflag [#allocation5], %s331
        %s333 = sand.u32 %s161, 1
        %s334 = smul.addr %s333, 256
        %s335 = scalar_lea.vmem [#allocation12], %s334
        %v337 = vld [vmem:[%s283] sm:$0xff]
        %v338 = vld [vmem:[%s283 + $0x8] sm:$0xff]
        %v339 = vld [vmem:[%s283 + $0x10] sm:$0xff]
        %v340 = vld [vmem:[%s283 + $0x18] sm:$0xff]
        %v341 = vld [vmem:[%s283 + $0x20] sm:$0xff]
        %v342 = vld [vmem:[%s283 + $0x28] sm:$0xff]
        %v343 = vld [vmem:[%s283 + $0x30] sm:$0xff]
        %v344 = vld [vmem:[%s283 + $0x38] sm:$0xff]
        %v345 = vld [vmem:[%s283 + $0x40] sm:$0xff]
        %v346 = vld [vmem:[%s283 + $0x48] sm:$0xff]
        %v347 = vld [vmem:[%s283 + $0x50] sm:$0xff]
        %v348 = vld [vmem:[%s283 + $0x58] sm:$0xff]
        %v349 = vld [vmem:[%s283 + $0x60] sm:$0xff]
        %v350 = vld [vmem:[%s283 + $0x68] sm:$0xff]
        %v351 = vld [vmem:[%s283 + $0x70] sm:$0xff]
        %v352 = vld [vmem:[%s283 + $0x78] sm:$0xff]
        %v353 = vld [vmem:[%s292] sm:$0xff]
        %v354 = vld [vmem:[%s292 + $0x8] sm:$0xf]
        %v355 = vld [vmem:[%s292 + $0xc] sm:$0xff]
        %v356 = vld [vmem:[%s292 + $0x14] sm:$0xf]
        %v357 = vld [vmem:[%s292 + $0x18] sm:$0xff]
        %v358 = vld [vmem:[%s292 + $0x20] sm:$0xf]
        %v359 = vld [vmem:[%s292 + $0x24] sm:$0xff]
        %v360 = vld [vmem:[%s292 + $0x2c] sm:$0xf]
        %v361 = vld [vmem:[%s292 + $0x30] sm:$0xff]
        %v362 = vld [vmem:[%s292 + $0x38] sm:$0xf]
        %v363 = vld [vmem:[%s292 + $0x3c] sm:$0xff]
        %v364 = vld [vmem:[%s292 + $0x44] sm:$0xf]
        %v365 = vld [vmem:[%s292 + $0x48] sm:$0xff]
        %v366 = vld [vmem:[%s292 + $0x50] sm:$0xf]
        %v367 = vld [vmem:[%s292 + $0x54] sm:$0xff]
        %v368 = vld [vmem:[%s292 + $0x5c] sm:$0xf]
        %v369 = vld [vmem:[%s292 + $0x60] sm:$0xff]
        %v370 = vld [vmem:[%s292 + $0x68] sm:$0xf]
        %v371 = vld [vmem:[%s292 + $0x6c] sm:$0xff]
        %v372 = vld [vmem:[%s292 + $0x74] sm:$0xf]
        %v373 = vld [vmem:[%s292 + $0x78] sm:$0xff]
        %v374 = vld [vmem:[%s292 + $0x80] sm:$0xf]
        %v375 = vld [vmem:[%s292 + $0x84] sm:$0xff]
        %v376 = vld [vmem:[%s292 + $0x8c] sm:$0xf]
        %v377 = vld [vmem:[%s292 + $0x90] sm:$0xff]
        %v378 = vld [vmem:[%s292 + $0x98] sm:$0xf]
        %v379 = vld [vmem:[%s292 + $0x9c] sm:$0xff]
        %v380 = vld [vmem:[%s292 + $0xa4] sm:$0xf]
        %v381 = vld [vmem:[%s292 + $0xa8] sm:$0xff]
        %v382 = vld [vmem:[%s292 + $0xb0] sm:$0xf]
        %v383 = vld [vmem:[%s292 + $0xb4] sm:$0xff]
        %v384 = vld [vmem:[%s292 + $0xbc] sm:$0xf]
        %v385 = vld [vmem:[%s292 + $0xc0] sm:$0xff]
        %v386 = vld [vmem:[%s292 + $0xc8] sm:$0xf]
        %v387 = vld [vmem:[%s292 + $0xcc] sm:$0xff]
        %v388 = vld [vmem:[%s292 + $0xd4] sm:$0xf]
        %v389 = vld [vmem:[%s292 + $0xd8] sm:$0xff]
        %v390 = vld [vmem:[%s292 + $0xe0] sm:$0xf]
        %v391 = vld [vmem:[%s292 + $0xe4] sm:$0xff]
        %v392 = vld [vmem:[%s292 + $0xec] sm:$0xf]
        %v393 = vld [vmem:[%s292 + $0xf0] sm:$0xff]
        %v394 = vld [vmem:[%s292 + $0xf8] sm:$0xf]
        %v395 = vld [vmem:[%s292 + $0xfc] sm:$0xff]
        %v396 = vld [vmem:[%s292 + $0x104] sm:$0xf]
        %v397 = vld [vmem:[%s292 + $0x108] sm:$0xff]
        %v398 = vld [vmem:[%s292 + $0x110] sm:$0xf]
        %v399 = vld [vmem:[%s292 + $0x114] sm:$0xff]
        %v400 = vld [vmem:[%s292 + $0x11c] sm:$0xf]
        %v401 = vld [vmem:[%s292 + $0x120] sm:$0xff]
        %v402 = vld [vmem:[%s292 + $0x128] sm:$0xf]
        %v403 = vld [vmem:[%s292 + $0x12c] sm:$0xff]
        %v404 = vld [vmem:[%s292 + $0x134] sm:$0xf]
        %v405 = vld [vmem:[%s292 + $0x138] sm:$0xff]
        %v406 = vld [vmem:[%s292 + $0x140] sm:$0xf]
        %v407 = vld [vmem:[%s292 + $0x144] sm:$0xff]
        %v408 = vld [vmem:[%s292 + $0x14c] sm:$0xf]
        %v409 = vld [vmem:[%s292 + $0x150] sm:$0xff]
        %v410 = vld [vmem:[%s292 + $0x158] sm:$0xf]
        %v411 = vld [vmem:[%s292 + $0x15c] sm:$0xff]
        %v412 = vld [vmem:[%s292 + $0x164] sm:$0xf]
        %v413 = vld [vmem:[%s292 + $0x168] sm:$0xff]
        %v414 = vld [vmem:[%s292 + $0x170] sm:$0xf]
        %v415 = vld [vmem:[%s292 + $0x174] sm:$0xff]
        %v416 = vld [vmem:[%s292 + $0x17c] sm:$0xf]
        %v417 = vld [vmem:[%s292 + $0x180] sm:$0xff]
        %v418 = vld [vmem:[%s292 + $0x188] sm:$0xf]
        %v419 = vld [vmem:[%s292 + $0x18c] sm:$0xff]
        %v420 = vld [vmem:[%s292 + $0x194] sm:$0xf]
        %v421 = vld [vmem:[%s292 + $0x198] sm:$0xff]
        %v422 = vld [vmem:[%s292 + $0x1a0] sm:$0xf]
        %v423 = vld [vmem:[%s292 + $0x1a4] sm:$0xff]
        %v424 = vld [vmem:[%s292 + $0x1ac] sm:$0xf]
        %v425 = vld [vmem:[%s292 + $0x1b0] sm:$0xff]
        %v426 = vld [vmem:[%s292 + $0x1b8] sm:$0xf]
        %v427 = vld [vmem:[%s292 + $0x1bc] sm:$0xff]
        %v428 = vld [vmem:[%s292 + $0x1c4] sm:$0xf]
        %v429 = vld [vmem:[%s292 + $0x1c8] sm:$0xff]
        %v430 = vld [vmem:[%s292 + $0x1d0] sm:$0xf]
        %v431 = vld [vmem:[%s292 + $0x1d4] sm:$0xff]
        %v432 = vld [vmem:[%s292 + $0x1dc] sm:$0xf]
        %v433 = vld [vmem:[%s292 + $0x1e0] sm:$0xff]
        %v434 = vld [vmem:[%s292 + $0x1e8] sm:$0xf]
        %v435 = vld [vmem:[%s292 + $0x1ec] sm:$0xff]
        %v436 = vld [vmem:[%s292 + $0x1f4] sm:$0xf]
        %v437 = vld [vmem:[%s292 + $0x1f8] sm:$0xff]
        %v438 = vld [vmem:[%s292 + $0x200] sm:$0xf]
        %v439 = vld [vmem:[%s292 + $0x204] sm:$0xff]
        %v440 = vld [vmem:[%s292 + $0x20c] sm:$0xf]
        %v441 = vld [vmem:[%s292 + $0x210] sm:$0xff]
        %v442 = vld [vmem:[%s292 + $0x218] sm:$0xf]
        %v443 = vld [vmem:[%s292 + $0x21c] sm:$0xff]
        %v444 = vld [vmem:[%s292 + $0x224] sm:$0xf]
        %v445 = vld [vmem:[%s292 + $0x228] sm:$0xff]
        %v446 = vld [vmem:[%s292 + $0x230] sm:$0xf]
        %v447 = vld [vmem:[%s292 + $0x234] sm:$0xff]
        %v448 = vld [vmem:[%s292 + $0x23c] sm:$0xf]
        %v449 = vld [vmem:[%s292 + $0x240] sm:$0xff]
        %v450 = vld [vmem:[%s292 + $0x248] sm:$0xf]
        %v451 = vld [vmem:[%s292 + $0x24c] sm:$0xff]
        %v452 = vld [vmem:[%s292 + $0x254] sm:$0xf]
        %v453 = vld [vmem:[%s292 + $0x258] sm:$0xff]
        %v454 = vld [vmem:[%s292 + $0x260] sm:$0xf]
        %v455 = vld [vmem:[%s292 + $0x264] sm:$0xff]
        %v456 = vld [vmem:[%s292 + $0x26c] sm:$0xf]
        %v457 = vld [vmem:[%s292 + $0x270] sm:$0xff]
        %v458 = vld [vmem:[%s292 + $0x278] sm:$0xf]
        %v459 = vld [vmem:[%s292 + $0x27c] sm:$0xff]
        %v460 = vld [vmem:[%s292 + $0x284] sm:$0xf]
        %v461 = vld [vmem:[%s292 + $0x288] sm:$0xff]
        %v462 = vld [vmem:[%s292 + $0x290] sm:$0xf]
        %v463 = vld [vmem:[%s292 + $0x294] sm:$0xff]
        %v464 = vld [vmem:[%s292 + $0x29c] sm:$0xf]
        %v465 = vld [vmem:[%s292 + $0x2a0] sm:$0xff]
        %v466 = vld [vmem:[%s292 + $0x2a8] sm:$0xf]
        %v467 = vld [vmem:[%s292 + $0x2ac] sm:$0xff]
        %v468 = vld [vmem:[%s292 + $0x2b4] sm:$0xf]
        %v469 = vld [vmem:[%s292 + $0x2b8] sm:$0xff]
        %v470 = vld [vmem:[%s292 + $0x2c0] sm:$0xf]
        %v471 = vld [vmem:[%s292 + $0x2c4] sm:$0xff]
        %v472 = vld [vmem:[%s292 + $0x2cc] sm:$0xf]
        %v473 = vld [vmem:[%s292 + $0x2d0] sm:$0xff]
        %v474 = vld [vmem:[%s292 + $0x2d8] sm:$0xf]
        %v475 = vld [vmem:[%s292 + $0x2dc] sm:$0xff]
        %v476 = vld [vmem:[%s292 + $0x2e4] sm:$0xf]
        %v477 = vld [vmem:[%s292 + $0x2e8] sm:$0xff]
        %v478 = vld [vmem:[%s292 + $0x2f0] sm:$0xf]
        %v479 = vld [vmem:[%s292 + $0x2f4] sm:$0xff]
        %v480 = vld [vmem:[%s292 + $0x2fc] sm:$0xf]
        %v497 = vunpack.c.l.b16 %v337
        %v498 = vunpack.c.h.b16 %v337
        %v499 = vunpack.c.l.b16 %v338
        %v500 = vunpack.c.h.b16 %v338
        %v501 = vunpack.c.l.b16 %v339
        %v502 = vunpack.c.h.b16 %v339
        %v503 = vunpack.c.l.b16 %v340
        %v504 = vunpack.c.h.b16 %v340
        %v505 = vunpack.c.l.b16 %v341
        %v506 = vunpack.c.h.b16 %v341
        %v507 = vunpack.c.l.b16 %v342
        %v508 = vunpack.c.h.b16 %v342
        %v509 = vunpack.c.l.b16 %v343
        %v510 = vunpack.c.h.b16 %v343
        %v511 = vunpack.c.l.b16 %v344
        %v512 = vunpack.c.h.b16 %v344
        %v513 = vunpack.c.l.b16 %v345
        %v514 = vunpack.c.h.b16 %v345
        %v515 = vunpack.c.l.b16 %v346
        %v516 = vunpack.c.h.b16 %v346
        %v517 = vunpack.c.l.b16 %v347
        %v518 = vunpack.c.h.b16 %v347
        %v519 = vunpack.c.l.b16 %v348
        %v520 = vunpack.c.h.b16 %v348
        %v521 = vunpack.c.l.b16 %v349
        %v522 = vunpack.c.h.b16 %v349
        %v523 = vunpack.c.l.b16 %v350
        %v524 = vunpack.c.h.b16 %v350
        %v525 = vunpack.c.l.b16 %v351
        %v526 = vunpack.c.h.b16 %v351
        %v527 = vunpack.c.l.b16 %v352
        %v528 = vunpack.c.h.b16 %v352
        %v529 = vpack.c.b16 %v501, %v497
        %v530 = vpack.c.b16 %v502, %v498
        %v531 = vpack.c.b16 %v503, %v499
        %v532 = vpack.c.b16 %v504, %v500
        %v533 = vpack.c.b16 %v509, %v505
        %v534 = vpack.c.b16 %v510, %v506
        %v535 = vpack.c.b16 %v511, %v507
        %v536 = vpack.c.b16 %v512, %v508
        %v537 = vpack.c.b16 %v517, %v513
        %v538 = vpack.c.b16 %v518, %v514
        %v539 = vpack.c.b16 %v519, %v515
        %v540 = vpack.c.b16 %v520, %v516
        %v541 = vpack.c.b16 %v525, %v521
        %v542 = vpack.c.b16 %v526, %v522
        %v543 = vpack.c.b16 %v527, %v523
        %v544 = vpack.c.b16 %v528, %v524
        %v689 = vunpack.c.l.b16 %v353
        %v690 = vunpack.c.h.b16 %v353
        %v691 = vunpack.c.l.b16 %v354
        %v692 = vunpack.c.l.b16 %v355
        %v693 = vunpack.c.h.b16 %v355
        %v694 = vunpack.c.l.b16 %v356
        %v695 = vunpack.c.l.b16 %v357
        %v696 = vunpack.c.h.b16 %v357
        %v697 = vunpack.c.l.b16 %v358
        %v698 = vunpack.c.l.b16 %v359
        %v699 = vunpack.c.h.b16 %v359
        %v700 = vunpack.c.l.b16 %v360
        %v701 = vunpack.c.l.b16 %v361
        %v702 = vunpack.c.h.b16 %v361
        %v703 = vunpack.c.l.b16 %v362
        %v704 = vunpack.c.l.b16 %v363
        %v705 = vunpack.c.h.b16 %v363
        %v706 = vunpack.c.l.b16 %v364
        %v707 = vunpack.c.l.b16 %v365
        %v708 = vunpack.c.h.b16 %v365
        %v709 = vunpack.c.l.b16 %v366
        %v710 = vunpack.c.l.b16 %v367
        %v711 = vunpack.c.h.b16 %v367
        %v712 = vunpack.c.l.b16 %v368
        %v713 = vunpack.c.l.b16 %v369
        %v714 = vunpack.c.h.b16 %v369
        %v715 = vunpack.c.l.b16 %v370
        %v716 = vunpack.c.l.b16 %v371
        %v717 = vunpack.c.h.b16 %v371
        %v718 = vunpack.c.l.b16 %v372
        %v719 = vunpack.c.l.b16 %v373
        %v720 = vunpack.c.h.b16 %v373
        %v721 = vunpack.c.l.b16 %v374
        %v722 = vunpack.c.l.b16 %v375
        %v723 = vunpack.c.h.b16 %v375
        %v724 = vunpack.c.l.b16 %v376
        %v725 = vunpack.c.l.b16 %v377
        %v726 = vunpack.c.h.b16 %v377
        %v727 = vunpack.c.l.b16 %v378
        %v728 = vunpack.c.l.b16 %v379
        %v729 = vunpack.c.h.b16 %v379
        %v730 = vunpack.c.l.b16 %v380
        %v731 = vunpack.c.l.b16 %v381
        %v732 = vunpack.c.h.b16 %v381
        %v733 = vunpack.c.l.b16 %v382
        %v734 = vunpack.c.l.b16 %v383
        %v735 = vunpack.c.h.b16 %v383
        %v736 = vunpack.c.l.b16 %v384
        %v737 = vunpack.c.l.b16 %v385
        %v738 = vunpack.c.h.b16 %v385
        %v739 = vunpack.c.l.b16 %v386
        %v740 = vunpack.c.l.b16 %v387
        %v741 = vunpack.c.h.b16 %v387
        %v742 = vunpack.c.l.b16 %v388
        %v743 = vunpack.c.l.b16 %v389
        %v744 = vunpack.c.h.b16 %v389
        %v745 = vunpack.c.l.b16 %v390
        %v746 = vunpack.c.l.b16 %v391
        %v747 = vunpack.c.h.b16 %v391
        %v748 = vunpack.c.l.b16 %v392
        %v749 = vunpack.c.l.b16 %v393
        %v750 = vunpack.c.h.b16 %v393
        %v751 = vunpack.c.l.b16 %v394
        %v752 = vunpack.c.l.b16 %v395
        %v753 = vunpack.c.h.b16 %v395
        %v754 = vunpack.c.l.b16 %v396
        %v755 = vunpack.c.l.b16 %v397
        %v756 = vunpack.c.h.b16 %v397
        %v757 = vunpack.c.l.b16 %v398
        %v758 = vunpack.c.l.b16 %v399
        %v759 = vunpack.c.h.b16 %v399
        %v760 = vunpack.c.l.b16 %v400
        %v761 = vunpack.c.l.b16 %v401
        %v762 = vunpack.c.h.b16 %v401
        %v763 = vunpack.c.l.b16 %v402
        %v764 = vunpack.c.l.b16 %v403
        %v765 = vunpack.c.h.b16 %v403
        %v766 = vunpack.c.l.b16 %v404
        %v767 = vunpack.c.l.b16 %v405
        %v768 = vunpack.c.h.b16 %v405
        %v769 = vunpack.c.l.b16 %v406
        %v770 = vunpack.c.l.b16 %v407
        %v771 = vunpack.c.h.b16 %v407
        %v772 = vunpack.c.l.b16 %v408
        %v773 = vunpack.c.l.b16 %v409
        %v774 = vunpack.c.h.b16 %v409
        %v775 = vunpack.c.l.b16 %v410
        %v776 = vunpack.c.l.b16 %v411
        %v777 = vunpack.c.h.b16 %v411
        %v778 = vunpack.c.l.b16 %v412
        %v779 = vunpack.c.l.b16 %v413
        %v780 = vunpack.c.h.b16 %v413
        %v781 = vunpack.c.l.b16 %v414
        %v782 = vunpack.c.l.b16 %v415
        %v783 = vunpack.c.h.b16 %v415
        %v784 = vunpack.c.l.b16 %v416
        %v785 = vunpack.c.l.b16 %v417
        %v786 = vunpack.c.h.b16 %v417
        %v787 = vunpack.c.l.b16 %v418
        %v788 = vunpack.c.l.b16 %v419
        %v789 = vunpack.c.h.b16 %v419
        %v790 = vunpack.c.l.b16 %v420
        %v791 = vunpack.c.l.b16 %v421
        %v792 = vunpack.c.h.b16 %v421
        %v793 = vunpack.c.l.b16 %v422
        %v794 = vunpack.c.l.b16 %v423
        %v795 = vunpack.c.h.b16 %v423
        %v796 = vunpack.c.l.b16 %v424
        %v797 = vunpack.c.l.b16 %v425
        %v798 = vunpack.c.h.b16 %v425
        %v799 = vunpack.c.l.b16 %v426
        %v800 = vunpack.c.l.b16 %v427
        %v801 = vunpack.c.h.b16 %v427
        %v802 = vunpack.c.l.b16 %v428
        %v803 = vunpack.c.l.b16 %v429
        %v804 = vunpack.c.h.b16 %v429
        %v805 = vunpack.c.l.b16 %v430
        %v806 = vunpack.c.l.b16 %v431
        %v807 = vunpack.c.h.b16 %v431
        %v808 = vunpack.c.l.b16 %v432
        %v809 = vunpack.c.l.b16 %v433
        %v810 = vunpack.c.h.b16 %v433
        %v811 = vunpack.c.l.b16 %v434
        %v812 = vunpack.c.l.b16 %v435
        %v813 = vunpack.c.h.b16 %v435
        %v814 = vunpack.c.l.b16 %v436
        %v815 = vunpack.c.l.b16 %v437
        %v816 = vunpack.c.h.b16 %v437
        %v817 = vunpack.c.l.b16 %v438
        %v818 = vunpack.c.l.b16 %v439
        %v819 = vunpack.c.h.b16 %v439
        %v820 = vunpack.c.l.b16 %v440
        %v821 = vunpack.c.l.b16 %v441
        %v822 = vunpack.c.h.b16 %v441
        %v823 = vunpack.c.l.b16 %v442
        %v824 = vunpack.c.l.b16 %v443
        %v825 = vunpack.c.h.b16 %v443
        %v826 = vunpack.c.l.b16 %v444
        %v827 = vunpack.c.l.b16 %v445
        %v828 = vunpack.c.h.b16 %v445
        %v829 = vunpack.c.l.b16 %v446
        %v830 = vunpack.c.l.b16 %v447
        %v831 = vunpack.c.h.b16 %v447
        %v832 = vunpack.c.l.b16 %v448
        %v833 = vunpack.c.l.b16 %v449
        %v834 = vunpack.c.h.b16 %v449
        %v835 = vunpack.c.l.b16 %v450
        %v836 = vunpack.c.l.b16 %v451
        %v837 = vunpack.c.h.b16 %v451
        %v838 = vunpack.c.l.b16 %v452
        %v839 = vunpack.c.l.b16 %v453
        %v840 = vunpack.c.h.b16 %v453
        %v841 = vunpack.c.l.b16 %v454
        %v842 = vunpack.c.l.b16 %v455
        %v843 = vunpack.c.h.b16 %v455
        %v844 = vunpack.c.l.b16 %v456
        %v845 = vunpack.c.l.b16 %v457
        %v846 = vunpack.c.h.b16 %v457
        %v847 = vunpack.c.l.b16 %v458
        %v848 = vunpack.c.l.b16 %v459
        %v849 = vunpack.c.h.b16 %v459
        %v850 = vunpack.c.l.b16 %v460
        %v851 = vunpack.c.l.b16 %v461
        %v852 = vunpack.c.h.b16 %v461
        %v853 = vunpack.c.l.b16 %v462
        %v854 = vunpack.c.l.b16 %v463
        %v855 = vunpack.c.h.b16 %v463
        %v856 = vunpack.c.l.b16 %v464
        %v857 = vunpack.c.l.b16 %v465
        %v858 = vunpack.c.h.b16 %v465
        %v859 = vunpack.c.l.b16 %v466
        %v860 = vunpack.c.l.b16 %v467
        %v861 = vunpack.c.h.b16 %v467
        %v862 = vunpack.c.l.b16 %v468
        %v863 = vunpack.c.l.b16 %v469
        %v864 = vunpack.c.h.b16 %v469
        %v865 = vunpack.c.l.b16 %v470
        %v866 = vunpack.c.l.b16 %v471
        %v867 = vunpack.c.h.b16 %v471
        %v868 = vunpack.c.l.b16 %v472
        %v869 = vunpack.c.l.b16 %v473
        %v870 = vunpack.c.h.b16 %v473
        %v871 = vunpack.c.l.b16 %v474
        %v872 = vunpack.c.l.b16 %v475
        %v873 = vunpack.c.h.b16 %v475
        %v874 = vunpack.c.l.b16 %v476
        %v875 = vunpack.c.l.b16 %v477
        %v876 = vunpack.c.h.b16 %v477
        %v877 = vunpack.c.l.b16 %v478
        %v878 = vunpack.c.l.b16 %v479
        %v879 = vunpack.c.h.b16 %v479
        %v880 = vunpack.c.l.b16 %v480
        %v881 = vpack.c.b16 %v692, %v689
        %v882 = vpack.c.b16 %v693, %v690
        %v883 = vpack.c.b16 %v694, %v691
        %v884 = vpack.c.b16 %v698, %v695
        %v885 = vpack.c.b16 %v699, %v696
        %v886 = vpack.c.b16 %v700, %v697
        %v887 = vpack.c.b16 %v704, %v701
        %v888 = vpack.c.b16 %v705, %v702
        %v889 = vpack.c.b16 %v706, %v703
        %v890 = vpack.c.b16 %v710, %v707
        %v891 = vpack.c.b16 %v711, %v708
        %v892 = vpack.c.b16 %v712, %v709
        %v893 = vpack.c.b16 %v716, %v713
        %v894 = vpack.c.b16 %v717, %v714
        %v895 = vpack.c.b16 %v718, %v715
        %v896 = vpack.c.b16 %v722, %v719
        %v897 = vpack.c.b16 %v723, %v720
        %v898 = vpack.c.b16 %v724, %v721
        %v899 = vpack.c.b16 %v728, %v725
        %v900 = vpack.c.b16 %v729, %v726
        %v901 = vpack.c.b16 %v730, %v727
        %v902 = vpack.c.b16 %v734, %v731
        %v903 = vpack.c.b16 %v735, %v732
        %v904 = vpack.c.b16 %v736, %v733
        %v905 = vpack.c.b16 %v740, %v737
        %v906 = vpack.c.b16 %v741, %v738
        %v907 = vpack.c.b16 %v742, %v739
        %v908 = vpack.c.b16 %v746, %v743
        %v909 = vpack.c.b16 %v747, %v744
        %v910 = vpack.c.b16 %v748, %v745
        %v911 = vpack.c.b16 %v752, %v749
        %v912 = vpack.c.b16 %v753, %v750
        %v913 = vpack.c.b16 %v754, %v751
        %v914 = vpack.c.b16 %v758, %v755
        %v915 = vpack.c.b16 %v759, %v756
        %v916 = vpack.c.b16 %v760, %v757
        %v917 = vpack.c.b16 %v764, %v761
        %v918 = vpack.c.b16 %v765, %v762
        %v919 = vpack.c.b16 %v766, %v763
        %v920 = vpack.c.b16 %v770, %v767
        %v921 = vpack.c.b16 %v771, %v768
        %v922 = vpack.c.b16 %v772, %v769
        %v923 = vpack.c.b16 %v776, %v773
        %v924 = vpack.c.b16 %v777, %v774
        %v925 = vpack.c.b16 %v778, %v775
        %v926 = vpack.c.b16 %v782, %v779
        %v927 = vpack.c.b16 %v783, %v780
        %v928 = vpack.c.b16 %v784, %v781
        %v929 = vpack.c.b16 %v788, %v785
        %v930 = vpack.c.b16 %v789, %v786
        %v931 = vpack.c.b16 %v790, %v787
        %v932 = vpack.c.b16 %v794, %v791
        %v933 = vpack.c.b16 %v795, %v792
        %v934 = vpack.c.b16 %v796, %v793
        %v935 = vpack.c.b16 %v800, %v797
        %v936 = vpack.c.b16 %v801, %v798
        %v937 = vpack.c.b16 %v802, %v799
        %v938 = vpack.c.b16 %v806, %v803
        %v939 = vpack.c.b16 %v807, %v804
        %v940 = vpack.c.b16 %v808, %v805
        %v941 = vpack.c.b16 %v812, %v809
        %v942 = vpack.c.b16 %v813, %v810
        %v943 = vpack.c.b16 %v814, %v811
        %v944 = vpack.c.b16 %v818, %v815
        %v945 = vpack.c.b16 %v819, %v816
        %v946 = vpack.c.b16 %v820, %v817
        %v947 = vpack.c.b16 %v824, %v821
        %v948 = vpack.c.b16 %v825, %v822
        %v949 = vpack.c.b16 %v826, %v823
        %v950 = vpack.c.b16 %v830, %v827
        %v951 = vpack.c.b16 %v831, %v828
        %v952 = vpack.c.b16 %v832, %v829
        %v953 = vpack.c.b16 %v836, %v833
        %v954 = vpack.c.b16 %v837, %v834
        %v955 = vpack.c.b16 %v838, %v835
        %v956 = vpack.c.b16 %v842, %v839
        %v957 = vpack.c.b16 %v843, %v840
        %v958 = vpack.c.b16 %v844, %v841
        %v959 = vpack.c.b16 %v848, %v845
        %v960 = vpack.c.b16 %v849, %v846
        %v961 = vpack.c.b16 %v850, %v847
        %v962 = vpack.c.b16 %v854, %v851
        %v963 = vpack.c.b16 %v855, %v852
        %v964 = vpack.c.b16 %v856, %v853
        %v965 = vpack.c.b16 %v860, %v857
        %v966 = vpack.c.b16 %v861, %v858
        %v967 = vpack.c.b16 %v862, %v859
        %v968 = vpack.c.b16 %v866, %v863
        %v969 = vpack.c.b16 %v867, %v864
        %v970 = vpack.c.b16 %v868, %v865
        %v971 = vpack.c.b16 %v872, %v869
        %v972 = vpack.c.b16 %v873, %v870
        %v973 = vpack.c.b16 %v874, %v871
        %v974 = vpack.c.b16 %v878, %v875
        %v975 = vpack.c.b16 %v879, %v876
        %v976 = vpack.c.b16 %v880, %v877
        %1073 = vmatprep.subr.bf16.mxu0 %v882
        %1074 = vmatpush1.bf16.msra.mxu0 %v881
        %1075 = vmatprep.subr.bf16.mxu0 %v885
        %1076 = vmatpush1.bf16.msra.mxu0 %v884
        %1077 = vmatprep.subr.bf16.mxu0 %v888
        %1078 = vmatpush1.bf16.msra.mxu0 %v887
        %1079 = vmatprep.subr.bf16.mxu0 %v891
        %1080 = vmatpush1.bf16.msra.mxu0 %v890
        %1081 = vmatprep.subr.bf16.mxu0 %v894
        %1082 = vmatpush1.bf16.msra.mxu0 %v893
        %1083 = vmatprep.subr.bf16.mxu0 %v897
        %1084 = vmatpush1.bf16.msra.mxu0 %v896
        %1085 = vmatprep.subr.bf16.mxu0 %v900
        %1086 = vmatpush1.bf16.msra.mxu0 %v899
        %1087 = vmatprep.subr.bf16.mxu0 %v903
        %1088 = vmatpush1.bf16.msra.mxu0 %v902
        %1089 = vmatprep.subr.bf16.mxu0 %v906
        %1090 = vmatpush1.bf16.msra.mxu0 %v905
        %1091 = vmatprep.subr.bf16.mxu0 %v909
        %1092 = vmatpush1.bf16.msra.mxu0 %v908
        %1093 = vmatprep.subr.bf16.mxu0 %v912
        %1094 = vmatpush1.bf16.msra.mxu0 %v911
        %1095 = vmatprep.subr.bf16.mxu0 %v915
        %1096 = vmatpush1.bf16.msra.mxu0 %v914
        %1097 = vmatprep.subr.bf16.mxu0 %v918
        %1098 = vmatpush1.bf16.msra.mxu0 %v917
        %1099 = vmatprep.subr.bf16.mxu0 %v921
        %1100 = vmatpush1.bf16.msra.mxu0 %v920
        %1101 = vmatprep.subr.bf16.mxu0 %v924
        %1102 = vmatpush1.bf16.msra.mxu0 %v923
        %1103 = vmatprep.subr.bf16.mxu0 %v927
        %1104 = vmatpush1.bf16.msra.mxu0 %v926
        %1105 = vmatprep.mubr.bf16.mxu0 %v530
        %1106 = vmatmul.mubr.bf16.gmra.mrb[0].mxu0 %v529
        %v1107 = vpop.f32.mrb[0].mxu0
        %v1108 = vadd.f32 0.0, %v1107
        %v1109 = vpop.f32.mrb[0].mxu0
        %v1110 = vadd.f32 0.0, %v1109
        %v1111 = vpop.f32.mrb[0].mxu0
        %v1112 = vadd.f32 0.0, %v1111
        %v1113 = vpop.f32.mrb[0].mxu0
        %v1114 = vadd.f32 0.0, %v1113
        %1115 = vmatprep.mubr.bf16.mxu0 %v534
        %1116 = vmatmul.mubr.bf16.gmra.mrb[0].mxu0 %v533
        %v1117 = vpop.f32.mrb[0].mxu0
        %v1118 = vadd.f32 0.0, %v1117
        %v1119 = vpop.f32.mrb[0].mxu0
        %v1120 = vadd.f32 0.0, %v1119
        %v1121 = vpop.f32.mrb[0].mxu0
        %v1122 = vadd.f32 0.0, %v1121
        %v1123 = vpop.f32.mrb[0].mxu0
        %v1124 = vadd.f32 0.0, %v1123
        %1125 = vmatprep.mubr.bf16.mxu0 %v538
        %1126 = vmatmul.mubr.bf16.gmra.mrb[0].mxu0 %v537
        %v1127 = vpop.f32.mrb[0].mxu0
        %v1128 = vadd.f32 0.0, %v1127
        %v1129 = vpop.f32.mrb[0].mxu0
        %v1130 = vadd.f32 0.0, %v1129
        %v1131 = vpop.f32.mrb[0].mxu0
        %v1132 = vadd.f32 0.0, %v1131
        %v1133 = vpop.f32.mrb[0].mxu0
        %v1134 = vadd.f32 0.0, %v1133
        %1135 = vmatprep.mubr.bf16.mxu0 %v542
        %1136 = vmatmul.mubr.bf16.gmra.mrb[0].mxu0 %v541
        %v1137 = vpop.f32.mrb[0].mxu0
        %v1138 = vadd.f32 0.0, %v1137
        %v1139 = vpop.f32.mrb[0].mxu0
        %v1140 = vadd.f32 0.0, %v1139
        %v1141 = vpop.f32.mrb[0].mxu0
        %v1142 = vadd.f32 0.0, %v1141
        %v1143 = vpop.f32.mrb[0].mxu0
        %v1144 = vadd.f32 0.0, %v1143
        %1145 = vdwg.mxu0
        %1146 = vmatprep.subr.bf16.mxu0 %v930
        %1147 = vmatpush1.bf16.msra.mxu0 %v929
        %1148 = vmatprep.subr.bf16.mxu0 %v933
        %1149 = vmatpush1.bf16.msra.mxu0 %v932
        %1150 = vmatprep.subr.bf16.mxu0 %v936
        %1151 = vmatpush1.bf16.msra.mxu0 %v935
        %1152 = vmatprep.subr.bf16.mxu0 %v939
        %1153 = vmatpush1.bf16.msra.mxu0 %v938
        %1154 = vmatprep.subr.bf16.mxu0 %v942
        %1155 = vmatpush1.bf16.msra.mxu0 %v941
        %1156 = vmatprep.subr.bf16.mxu0 %v945
        %1157 = vmatpush1.bf16.msra.mxu0 %v944
        %1158 = vmatprep.subr.bf16.mxu0 %v948
        %1159 = vmatpush1.bf16.msra.mxu0 %v947
        %1160 = vmatprep.subr.bf16.mxu0 %v951
        %1161 = vmatpush1.bf16.msra.mxu0 %v950
        %1162 = vmatprep.subr.bf16.mxu0 %v954
        %1163 = vmatpush1.bf16.msra.mxu0 %v953
        %1164 = vmatprep.subr.bf16.mxu0 %v957
        %1165 = vmatpush1.bf16.msra.mxu0 %v956
        %1166 = vmatprep.subr.bf16.mxu0 %v960
        %1167 = vmatpush1.bf16.msra.mxu0 %v959
        %1168 = vmatprep.subr.bf16.mxu0 %v963
        %1169 = vmatpush1.bf16.msra.mxu0 %v962
        %1170 = vmatprep.subr.bf16.mxu0 %v966
        %1171 = vmatpush1.bf16.msra.mxu0 %v965
        %1172 = vmatprep.subr.bf16.mxu0 %v969
        %1173 = vmatpush1.bf16.msra.mxu0 %v968
        %1174 = vmatprep.subr.bf16.mxu0 %v972
        %1175 = vmatpush1.bf16.msra.mxu0 %v971
        %1176 = vmatprep.subr.bf16.mxu0 %v975
        %1177 = vmatpush1.bf16.msra.mxu0 %v974
        %1178 = vmatprep.mubr.bf16.mxu0 %v532
        %1179 = vmatmul.mubr.bf16.gmra.mrb[0].mxu0 %v531
        %v1180 = vpop.f32.mrb[0].mxu0
        %v1181 = vadd.f32 %v1108, %v1180
        %v1182 = vpop.f32.mrb[0].mxu0
        %v1183 = vadd.f32 %v1110, %v1182
        %v1184 = vpop.f32.mrb[0].mxu0
        %v1185 = vadd.f32 %v1112, %v1184
        %v1186 = vpop.f32.mrb[0].mxu0
        %v1187 = vadd.f32 %v1114, %v1186
        %1188 = vmatprep.mubr.bf16.mxu0 %v536
        %1189 = vmatmul.mubr.bf16.gmra.mrb[0].mxu0 %v535
        %v1190 = vpop.f32.mrb[0].mxu0
        %v1191 = vadd.f32 %v1118, %v1190
        %v1192 = vpop.f32.mrb[0].mxu0
        %v1193 = vadd.f32 %v1120, %v1192
        %v1194 = vpop.f32.mrb[0].mxu0
        %v1195 = vadd.f32 %v1122, %v1194
        %v1196 = vpop.f32.mrb[0].mxu0
        %v1197 = vadd.f32 %v1124, %v1196
        %1198 = vmatprep.mubr.bf16.mxu0 %v540
        %1199 = vmatmul.mubr.bf16.gmra.mrb[0].mxu0 %v539
        %v1200 = vpop.f32.mrb[0].mxu0
        %v1201 = vadd.f32 %v1128, %v1200
        %v1202 = vpop.f32.mrb[0].mxu0
        %v1203 = vadd.f32 %v1130, %v1202
        %v1204 = vpop.f32.mrb[0].mxu0
        %v1205 = vadd.f32 %v1132, %v1204
        %v1206 = vpop.f32.mrb[0].mxu0
        %v1207 = vadd.f32 %v1134, %v1206
        %1208 = vmatprep.mubr.bf16.mxu0 %v544
        %1209 = vmatmul.mubr.bf16.gmra.mrb[0].mxu0 %v543
        %v1210 = vpop.f32.mrb[0].mxu0
        %v1211 = vadd.f32 %v1138, %v1210
        %v1212 = vpop.f32.mrb[0].mxu0
        %v1213 = vadd.f32 %v1140, %v1212
        %v1214 = vpop.f32.mrb[0].mxu0
        %v1215 = vadd.f32 %v1142, %v1214
        %v1216 = vpop.f32.mrb[0].mxu0
        %v1217 = vadd.f32 %v1144, %v1216
        %1218 = vdwg.mxu0
        %1219 = vmatprep.subr.bf16.mxu0 0
        %1220 = vmatpush1.bf16.msra.mxu0 %v883
        %1221 = vmatprep.subr.bf16.mxu0 0
        %1222 = vmatpush1.bf16.msra.mxu0 %v886
        %1223 = vmatprep.subr.bf16.mxu0 0
        %1224 = vmatpush1.bf16.msra.mxu0 %v889
        %1225 = vmatprep.subr.bf16.mxu0 0
        %1226 = vmatpush1.bf16.msra.mxu0 %v892
        %1227 = vmatprep.subr.bf16.mxu0 0
        %1228 = vmatpush1.bf16.msra.mxu0 %v895
        %1229 = vmatprep.subr.bf16.mxu0 0
        %1230 = vmatpush1.bf16.msra.mxu0 %v898
        %1231 = vmatprep.subr.bf16.mxu0 0
        %1232 = vmatpush1.bf16.msra.mxu0 %v901
        %1233 = vmatprep.subr.bf16.mxu0 0
        %1234 = vmatpush1.bf16.msra.mxu0 %v904
        %1235 = vmatprep.subr.bf16.mxu0 0
        %1236 = vmatpush1.bf16.msra.mxu0 %v907
        %1237 = vmatprep.subr.bf16.mxu0 0
        %1238 = vmatpush1.bf16.msra.mxu0 %v910
        %1239 = vmatprep.subr.bf16.mxu0 0
        %1240 = vmatpush1.bf16.msra.mxu0 %v913
        %1241 = vmatprep.subr.bf16.mxu0 0
        %1242 = vmatpush1.bf16.msra.mxu0 %v916
        %1243 = vmatprep.subr.bf16.mxu0 0
        %1244 = vmatpush1.bf16.msra.mxu0 %v919
        %1245 = vmatprep.subr.bf16.mxu0 0
        %1246 = vmatpush1.bf16.msra.mxu0 %v922
        %1247 = vmatprep.subr.bf16.mxu0 0
        %1248 = vmatpush1.bf16.msra.mxu0 %v925
        %1249 = vmatprep.subr.bf16.mxu0 0
        %1250 = vmatpush1.bf16.msra.mxu0 %v928
        %1251 = vmatprep.mubr.bf16.mxu0 %v530
        %1252 = vmatmul.mubr.bf16.gmra.mrb[0].mxu0 %v529
        %v1253 = vpop.f32.mrb[0].mxu0
        %v1254 = vadd.f32 0.0, %v1253
        %v1255 = vpop.f32.mrb[0].mxu0
        %v1256 = vpop.f32.mrb[0].mxu0
        %v1257 = vadd.f32 0.0, %v1256
        %v1258 = vpop.f32.mrb[0].mxu0
        %1259 = vmatprep.mubr.bf16.mxu0 %v534
        %1260 = vmatmul.mubr.bf16.gmra.mrb[0].mxu0 %v533
        %v1261 = vpop.f32.mrb[0].mxu0
        %v1262 = vadd.f32 0.0, %v1261
        %v1263 = vpop.f32.mrb[0].mxu0
        %v1264 = vpop.f32.mrb[0].mxu0
        %v1265 = vadd.f32 0.0, %v1264
        %v1266 = vpop.f32.mrb[0].mxu0
        %1267 = vmatprep.mubr.bf16.mxu0 %v538
        %1268 = vmatmul.mubr.bf16.gmra.mrb[0].mxu0 %v537
        %v1269 = vpop.f32.mrb[0].mxu0
        %v1270 = vadd.f32 0.0, %v1269
        %v1271 = vpop.f32.mrb[0].mxu0
        %v1272 = vpop.f32.mrb[0].mxu0
        %v1273 = vadd.f32 0.0, %v1272
        %v1274 = vpop.f32.mrb[0].mxu0
        %1275 = vmatprep.mubr.bf16.mxu0 %v542
        %1276 = vmatmul.mubr.bf16.gmra.mrb[0].mxu0 %v541
        %v1277 = vpop.f32.mrb[0].mxu0
        %v1278 = vadd.f32 0.0, %v1277
        %v1279 = vpop.f32.mrb[0].mxu0
        %v1280 = vpop.f32.mrb[0].mxu0
        %v1281 = vadd.f32 0.0, %v1280
        %v1282 = vpop.f32.mrb[0].mxu0
        %1283 = vdwg.mxu0
        %1284 = vmatprep.subr.bf16.mxu0 0
        %1285 = vmatpush1.bf16.msra.mxu0 %v931
        %1286 = vmatprep.subr.bf16.mxu0 0
        %1287 = vmatpush1.bf16.msra.mxu0 %v934
        %1288 = vmatprep.subr.bf16.mxu0 0
        %1289 = vmatpush1.bf16.msra.mxu0 %v937
        %1290 = vmatprep.subr.bf16.mxu0 0
        %1291 = vmatpush1.bf16.msra.mxu0 %v940
        %1292 = vmatprep.subr.bf16.mxu0 0
        %1293 = vmatpush1.bf16.msra.mxu0 %v943
        %1294 = vmatprep.subr.bf16.mxu0 0
        %1295 = vmatpush1.bf16.msra.mxu0 %v946
        %1296 = vmatprep.subr.bf16.mxu0 0
        %1297 = vmatpush1.bf16.msra.mxu0 %v949
        %1298 = vmatprep.subr.bf16.mxu0 0
        %1299 = vmatpush1.bf16.msra.mxu0 %v952
        %1300 = vmatprep.subr.bf16.mxu0 0
        %1301 = vmatpush1.bf16.msra.mxu0 %v955
        %1302 = vmatprep.subr.bf16.mxu0 0
        %1303 = vmatpush1.bf16.msra.mxu0 %v958
        %1304 = vmatprep.subr.bf16.mxu0 0
        %1305 = vmatpush1.bf16.msra.mxu0 %v961
        %1306 = vmatprep.subr.bf16.mxu0 0
        %1307 = vmatpush1.bf16.msra.mxu0 %v964
        %1308 = vmatprep.subr.bf16.mxu0 0
        %1309 = vmatpush1.bf16.msra.mxu0 %v967
        %1310 = vmatprep.subr.bf16.mxu0 0
        %1311 = vmatpush1.bf16.msra.mxu0 %v970
        %1312 = vmatprep.subr.bf16.mxu0 0
        %1313 = vmatpush1.bf16.msra.mxu0 %v973
        %1314 = vmatprep.subr.bf16.mxu0 0
        %1315 = vmatpush1.bf16.msra.mxu0 %v976
        %1316 = vmatprep.mubr.bf16.mxu0 %v532
        %1317 = vmatmul.mubr.bf16.gmra.mrb[0].mxu0 %v531
        %v1318 = vpop.f32.mrb[0].mxu0
        %v1319 = vadd.f32 %v1254, %v1318
        %v1320 = vpop.f32.mrb[0].mxu0
        %v1321 = vpop.f32.mrb[0].mxu0
        %v1322 = vadd.f32 %v1257, %v1321
        %v1323 = vpop.f32.mrb[0].mxu0
        %1324 = vmatprep.mubr.bf16.mxu0 %v536
        %1325 = vmatmul.mubr.bf16.gmra.mrb[0].mxu0 %v535
        %v1326 = vpop.f32.mrb[0].mxu0
        %v1327 = vadd.f32 %v1262, %v1326
        %v1328 = vpop.f32.mrb[0].mxu0
        %v1329 = vpop.f32.mrb[0].mxu0
        %v1330 = vadd.f32 %v1265, %v1329
        %v1331 = vpop.f32.mrb[0].mxu0
        %1332 = vmatprep.mubr.bf16.mxu0 %v540
        %1333 = vmatmul.mubr.bf16.gmra.mrb[0].mxu0 %v539
        %v1334 = vpop.f32.mrb[0].mxu0
        %v1335 = vadd.f32 %v1270, %v1334
        %v1336 = vpop.f32.mrb[0].mxu0
        %v1337 = vpop.f32.mrb[0].mxu0
        %v1338 = vadd.f32 %v1273, %v1337
        %v1339 = vpop.f32.mrb[0].mxu0
        %1340 = vmatprep.mubr.bf16.mxu0 %v544
        %1341 = vmatmul.mubr.bf16.gmra.mrb[0].mxu0 %v543
        %v1342 = vpop.f32.mrb[0].mxu0
        %v1343 = vadd.f32 %v1278, %v1342
        %v1344 = vpop.f32.mrb[0].mxu0
        %v1345 = vpop.f32.mrb[0].mxu0
        %v1346 = vadd.f32 %v1281, %v1345
        %v1347 = vpop.f32.mrb[0].mxu0
        %1348 = vdwg.mxu0
        %v1349 = vpack.c.bf16 %v1185, %v1181
        %v1350 = vpack.c.bf16 %v1187, %v1183
        %v1351 = vpack.c.bf16 %v1322, %v1319
        %v1352 = vpack.c.bf16 %v1195, %v1191
        %v1353 = vpack.c.bf16 %v1197, %v1193
        %v1354 = vpack.c.bf16 %v1330, %v1327
        %v1355 = vpack.c.bf16 %v1205, %v1201
        %v1356 = vpack.c.bf16 %v1207, %v1203
        %v1357 = vpack.c.bf16 %v1338, %v1335
        %v1358 = vpack.c.bf16 %v1215, %v1211
        %v1359 = vpack.c.bf16 %v1217, %v1213
        %v1360 = vpack.c.bf16 %v1346, %v1343
        %v1361 = vld [vmem:[#allocation11] sm:$0xff]
        %v1362 = vld [vmem:[#allocation11 + $0x8] sm:$0xff]
        %v1363 = vld [vmem:[#allocation11 + $0x10] sm:$0xff]
        %v1364 = vld [vmem:[#allocation11 + $0x18] sm:$0xff]
        %v1365 = vld [vmem:[#allocation11 + $0x20] sm:$0xff]
        %v1366 = vld [vmem:[#allocation11 + $0x28] sm:$0xff]
        %v1367 = vld [vmem:[#allocation11 + $0x30] sm:$0xff]
        %v1368 = vld [vmem:[#allocation11 + $0x38] sm:$0xff]
        %1369 = vmatprep.subr.bf16.mxu0 0
        %1370 = vmatpush1.bf16.xpose.msra.mxu0 %v1350
        %1371 = vmatprep.subr.bf16.mxu0 0
        %1372 = vmatpush1.bf16.xpose.msra.mxu0 %v1353
        %1373 = vmatprep.subr.bf16.mxu0 0
        %1374 = vmatpush1.bf16.xpose.msra.mxu0 %v1356
        %1375 = vmatprep.subr.bf16.mxu0 0
        %1376 = vmatpush1.bf16.xpose.msra.mxu0 %v1359
        %1377 = vmatprep.subr.bf16.mxu0 0
        %1378 = vmatpush1.bf16.xpose.msra.mxu0 0
        %1379 = vmatprep.subr.bf16.mxu0 0
        %1380 = vmatpush1.bf16.xpose.msra.mxu0 0
        %1381 = vmatprep.subr.bf16.mxu0 0
        %1382 = vmatpush1.bf16.xpose.msra.mxu0 0
        %1383 = vmatprep.subr.bf16.mxu0 0
        %1384 = vmatpush1.bf16.xpose.msra.mxu0 0
        %1385 = vmatprep.subr.bf16.mxu0 0
        %1386 = vmatpush1.bf16.xpose.msra.mxu0 0
        %1387 = vmatprep.subr.bf16.mxu0 0
        %1388 = vmatpush1.bf16.xpose.msra.mxu0 0
        %1389 = vmatprep.subr.bf16.mxu0 0
        %1390 = vmatpush1.bf16.xpose.msra.mxu0 0
        %1391 = vmatprep.subr.bf16.mxu0 0
        %1392 = vmatpush1.bf16.xpose.msra.mxu0 0
        %1393 = vmatprep.subr.bf16.mxu0 0
        %1394 = vmatpush1.bf16.xpose.msra.mxu0 0
        %1395 = vmatprep.subr.bf16.mxu0 0
        %1396 = vmatpush1.bf16.xpose.msra.mxu0 0
        %1397 = vmatprep.subr.bf16.mxu0 0
        %1398 = vmatpush1.bf16.xpose.msra.mxu0 0
        %1399 = vmatprep.subr.bf16.mxu0 0
        %1400 = vmatpush1.bf16.xpose.msra.mxu0 0
        %1401 = vmatprep.mubr.bf16.mxu0 0
        %1402 = vmatmul.mubr.bf16.gmra.mrb[0].mxu0 %v1349
        %v1403 = vpop.f32.mrb[0].mxu0
        %v1404 = vadd.f32 %v1361, %v1403
        %v1405 = vpop.f32.mrb[0].mxu0
        %v1406 = vpop.f32.mrb[0].mxu0
        %v1407 = vadd.f32 %v1362, %v1406
        %v1408 = vpop.f32.mrb[0].mxu0
        %1409 = vmatprep.mubr.bf16.mxu0 0
        %1410 = vmatmul.mubr.bf16.gmra.mrb[0].mxu0 %v1352
        %v1411 = vpop.f32.mrb[0].mxu0
        %v1412 = vadd.f32 %v1363, %v1411
        %v1413 = vpop.f32.mrb[0].mxu0
        %v1414 = vpop.f32.mrb[0].mxu0
        %v1415 = vadd.f32 %v1364, %v1414
        %v1416 = vpop.f32.mrb[0].mxu0
        %1417 = vmatprep.mubr.bf16.mxu0 0
        %1418 = vmatmul.mubr.bf16.gmra.mrb[0].mxu0 %v1355
        %v1419 = vpop.f32.mrb[0].mxu0
        %v1420 = vadd.f32 %v1365, %v1419
        %v1421 = vpop.f32.mrb[0].mxu0
        %v1422 = vpop.f32.mrb[0].mxu0
        %v1423 = vadd.f32 %v1366, %v1422
        %v1424 = vpop.f32.mrb[0].mxu0
        %1425 = vmatprep.mubr.bf16.mxu0 0
        %1426 = vmatmul.mubr.bf16.gmra.mrb[0].mxu0 %v1358
        %v1427 = vpop.f32.mrb[0].mxu0
        %v1428 = vadd.f32 %v1367, %v1427
        %v1429 = vpop.f32.mrb[0].mxu0
        %v1430 = vpop.f32.mrb[0].mxu0
        %v1431 = vadd.f32 %v1368, %v1430
        %v1432 = vpop.f32.mrb[0].mxu0
        %1433 = vdwg.mxu0
        %vm1434 = vcmask 523264
        %v1435 = vsel %vm1434, %v1404, -inf
        %1436 = vmax.xlane.f32.xlu0 %v1435
        %v1437 = vpop.xlane.xlu0 %1436
        %v1438 = vsel %vm1434, %v1407, -inf
        %1439 = vmax.xlane.f32.xlu0 %v1438
        %v1440 = vpop.xlane.xlu0 %1439
        %v1441 = vsel %vm1434, %v1412, -inf
        %1442 = vmax.xlane.f32.xlu0 %v1441
        %v1443 = vpop.xlane.xlu0 %1442
        %v1444 = vsel %vm1434, %v1415, -inf
        %1445 = vmax.xlane.f32.xlu0 %v1444
        %v1446 = vpop.xlane.xlu0 %1445
        %v1447 = vsel %vm1434, %v1420, -inf
        %1448 = vmax.xlane.f32.xlu0 %v1447
        %v1449 = vpop.xlane.xlu0 %1448
        %v1450 = vsel %vm1434, %v1423, -inf
        %1451 = vmax.xlane.f32.xlu0 %v1450
        %v1452 = vpop.xlane.xlu0 %1451
        %v1453 = vsel %vm1434, %v1428, -inf
        %1454 = vmax.xlane.f32.xlu0 %v1453
        %v1455 = vpop.xlane.xlu0 %1454
        %v1456 = vsel %vm1434, %v1431, -inf
        %1457 = vmax.xlane.f32.xlu0 %v1456
        %v1458 = vpop.xlane.xlu0 %1457
        %v1459 = vsub.f32 %v1404, %v1437
        %v1460 = vsub.f32 %v1407, %v1440
        %v1461 = vsub.f32 %v1412, %v1443
        %v1462 = vsub.f32 %v1415, %v1446
        %v1463 = vsub.f32 %v1420, %v1449
        %v1464 = vsub.f32 %v1423, %v1452
        %v1465 = vsub.f32 %v1428, %v1455
        %v1466 = vsub.f32 %v1431, %v1458
        %v1467 = vmul.f32 %v1459, 1.442695
        %v1468 = vpow.pop %v1467
        %v1469 = vmul.f32 %v1460, 1.442695
        %v1470 = vpow.pop %v1469
        %v1471 = vmul.f32 %v1461, 1.442695
        %v1472 = vpow.pop %v1471
        %v1473 = vmul.f32 %v1462, 1.442695
        %v1474 = vpow.pop %v1473
        %v1475 = vmul.f32 %v1463, 1.442695
        %v1476 = vpow.pop %v1475
        %v1477 = vmul.f32 %v1464, 1.442695
        %v1478 = vpow.pop %v1477
        %v1479 = vmul.f32 %v1465, 1.442695
        %v1480 = vpow.pop %v1479
        %v1481 = vmul.f32 %v1466, 1.442695
        %v1482 = vpow.pop %v1481
        %v1483 = vsel %vm1434, %v1468, 0.0
        %1484 = vadd.xlane.f32.xlu0 %v1483
        %v1485 = vpop.xlane.xlu0 %1484
        %v1486 = vsel %vm1434, %v1470, 0.0
        %1487 = vadd.xlane.f32.xlu0 %v1486
        %v1488 = vpop.xlane.xlu0 %1487
        %v1489 = vsel %vm1434, %v1472, 0.0
        %1490 = vadd.xlane.f32.xlu0 %v1489
        %v1491 = vpop.xlane.xlu0 %1490
        %v1492 = vsel %vm1434, %v1474, 0.0
        %1493 = vadd.xlane.f32.xlu0 %v1492
        %v1494 = vpop.xlane.xlu0 %1493
        %v1495 = vsel %vm1434, %v1476, 0.0
        %1496 = vadd.xlane.f32.xlu0 %v1495
        %v1497 = vpop.xlane.xlu0 %1496
        %v1498 = vsel %vm1434, %v1478, 0.0
        %1499 = vadd.xlane.f32.xlu0 %v1498
        %v1500 = vpop.xlane.xlu0 %1499
        %v1501 = vsel %vm1434, %v1480, 0.0
        %1502 = vadd.xlane.f32.xlu0 %v1501
        %v1503 = vpop.xlane.xlu0 %1502
        %v1504 = vsel %vm1434, %v1482, 0.0
        %1505 = vadd.xlane.f32.xlu0 %v1504
        %v1506 = vpop.xlane.xlu0 %1505
        %v1507 = vpack.c.bf16 %v1470, %v1468
        %v1508 = vpack.c.bf16 %v1474, %v1472
        %v1509 = vpack.c.bf16 %v1478, %v1476
        %v1510 = vpack.c.bf16 %v1482, %v1480
        %v1512 = vsel %vm1434, %v1507, 0
        %v1515 = vsel %vm1434, %v1508, 0
        %v1518 = vsel %vm1434, %v1509, 0
        %v1521 = vsel %vm1434, %v1510, 0
        %1523 = vmatprep.subr.bf16.mxu0 0
        %1524 = vmatpush1.bf16.msra.mxu0 %v1351
        %1525 = vmatprep.subr.bf16.mxu0 0
        %1526 = vmatpush1.bf16.msra.mxu0 %v1354
        %1527 = vmatprep.subr.bf16.mxu0 0
        %1528 = vmatpush1.bf16.msra.mxu0 %v1357
        %1529 = vmatprep.subr.bf16.mxu0 0
        %1530 = vmatpush1.bf16.msra.mxu0 %v1360
        %1531 = vmatprep.subr.bf16.mxu0 0
        %1532 = vmatpush1.bf16.msra.mxu0 0
        %1533 = vmatprep.subr.bf16.mxu0 0
        %1534 = vmatpush1.bf16.msra.mxu0 0
        %1535 = vmatprep.subr.bf16.mxu0 0
        %1536 = vmatpush1.bf16.msra.mxu0 0
        %1537 = vmatprep.subr.bf16.mxu0 0
        %1538 = vmatpush1.bf16.msra.mxu0 0
        %1539 = vmatprep.subr.bf16.mxu0 0
        %1540 = vmatpush1.bf16.msra.mxu0 0
        %1541 = vmatprep.subr.bf16.mxu0 0
        %1542 = vmatpush1.bf16.msra.mxu0 0
        %1543 = vmatprep.subr.bf16.mxu0 0
        %1544 = vmatpush1.bf16.msra.mxu0 0
        %1545 = vmatprep.subr.bf16.mxu0 0
        %1546 = vmatpush1.bf16.msra.mxu0 0
        %1547 = vmatprep.subr.bf16.mxu0 0
        %1548 = vmatpush1.bf16.msra.mxu0 0
        %1549 = vmatprep.subr.bf16.mxu0 0
        %1550 = vmatpush1.bf16.msra.mxu0 0
        %1551 = vmatprep.subr.bf16.mxu0 0
        %1552 = vmatpush1.bf16.msra.mxu0 0
        %1553 = vmatprep.subr.bf16.mxu0 0
        %1554 = vmatpush1.bf16.msra.mxu0 0
        %1555 = vmatprep.mubr.bf16.mxu0 0
        %1556 = vmatmul.mubr.bf16.gmra.mrb[0].mxu0 %v1512
        %v1557 = vpop.f32.mrb[0].mxu0
        %v1558 = vadd.f32 0.0, %v1557
        %v1559 = vpop.f32.mrb[0].mxu0
        %v1560 = vpop.f32.mrb[0].mxu0
        %v1561 = vadd.f32 0.0, %v1560
        %v1562 = vpop.f32.mrb[0].mxu0
        %1563 = vmatprep.mubr.bf16.mxu0 0
        %1564 = vmatmul.mubr.bf16.gmra.mrb[0].mxu0 %v1515
        %v1565 = vpop.f32.mrb[0].mxu0
        %v1566 = vadd.f32 0.0, %v1565
        %v1567 = vpop.f32.mrb[0].mxu0
        %v1568 = vpop.f32.mrb[0].mxu0
        %v1569 = vadd.f32 0.0, %v1568
        %v1570 = vpop.f32.mrb[0].mxu0
        %1571 = vmatprep.mubr.bf16.mxu0 0
        %1572 = vmatmul.mubr.bf16.gmra.mrb[0].mxu0 %v1518
        %v1573 = vpop.f32.mrb[0].mxu0
        %v1574 = vadd.f32 0.0, %v1573
        %v1575 = vpop.f32.mrb[0].mxu0
        %v1576 = vpop.f32.mrb[0].mxu0
        %v1577 = vadd.f32 0.0, %v1576
        %v1578 = vpop.f32.mrb[0].mxu0
        %1579 = vmatprep.mubr.bf16.mxu0 0
        %1580 = vmatmul.mubr.bf16.gmra.mrb[0].mxu0 %v1521
        %v1581 = vpop.f32.mrb[0].mxu0
        %v1582 = vadd.f32 0.0, %v1581
        %v1583 = vpop.f32.mrb[0].mxu0
        %v1584 = vpop.f32.mrb[0].mxu0
        %v1585 = vadd.f32 0.0, %v1584
        %v1586 = vpop.f32.mrb[0].mxu0
        %1587 = vdwg.mxu0
        %v1588 = vrcp.pop %v1485
        %v1589 = vrcp.pop %v1488
        %v1590 = vrcp.pop %v1491
        %v1591 = vrcp.pop %v1494
        %v1592 = vrcp.pop %v1497
        %v1593 = vrcp.pop %v1500
        %v1594 = vrcp.pop %v1503
        %v1595 = vrcp.pop %v1506
        %v1596 = vmul.f32 %v1558, %v1588
        %v1597 = vmul.f32 %v1561, %v1589
        %v1598 = vmul.f32 %v1566, %v1590
        %v1599 = vmul.f32 %v1569, %v1591
        %v1600 = vmul.f32 %v1574, %v1592
        %v1601 = vmul.f32 %v1577, %v1593
        %v1602 = vmul.f32 %v1582, %v1594
        %v1603 = vmul.f32 %v1585, %v1595
        %s1604 = smul.u32 %s31, 128
        %v1605 = vpack.c.bf16 %v1597, %v1596
        %v1606 = vpack.c.bf16 %v1599, %v1598
        %v1607 = vpack.c.bf16 %v1601, %v1600
        %v1608 = vpack.c.bf16 %v1603, %v1602
        %s1609 = sshra.s32 %s1604, 7
        %s1610 = sand.u32 %s1604, 127
        %s1611 = smul.addr %s1609, 8
        %s1612 = scalar_lea.vmem [#allocation2], %s1611
        %1613 = vst [vmem:[%s1612] sm:$0xff] %v1605
        %1614 = vst [vmem:[%s1612 + $0x20] sm:$0xff] %v1606
        %1615 = vst [vmem:[%s1612 + $0x40] sm:$0xff] %v1607
        %1616 = vst [vmem:[%s1612 + $0x60] sm:$0xff] %v1608
        %p1617 = scmp.eq.s32.totalorder %s31, 3
        // Predicated region
        $region61: #{tpu_custom_call.1} parent=39 // pred_check
          %p1618 = pneg %p1617
        $region62: #{tpu_custom_call.1} parent=39 // pred_check_branch
          %1620 = sbr.rel (%p1618) target = $region64
        $region63: #{tpu_custom_call.1} parent=39 // pred_region
          %v1621 = vld [vmem:[#allocation2] sm:$0xff]
          %v1622 = vld [vmem:[#allocation2 + $0x8] sm:$0xff]
          %v1623 = vld [vmem:[#allocation2 + $0x10] sm:$0xff]
          %v1624 = vld [vmem:[#allocation2 + $0x18] sm:$0xff]
          %v1625 = vld [vmem:[#allocation2 + $0x20] sm:$0xff]
          %v1626 = vld [vmem:[#allocation2 + $0x28] sm:$0xff]
          %v1627 = vld [vmem:[#allocation2 + $0x30] sm:$0xff]
          %v1628 = vld [vmem:[#allocation2 + $0x38] sm:$0xff]
          %v1629 = vld [vmem:[#allocation2 + $0x40] sm:$0xff]
          %v1630 = vld [vmem:[#allocation2 + $0x48] sm:$0xff]
          %v1631 = vld [vmem:[#allocation2 + $0x50] sm:$0xff]
          %v1632 = vld [vmem:[#allocation2 + $0x58] sm:$0xff]
          %v1633 = vld [vmem:[#allocation2 + $0x60] sm:$0xff]
          %v1634 = vld [vmem:[#allocation2 + $0x68] sm:$0xff]
          %v1635 = vld [vmem:[#allocation2 + $0x70] sm:$0xff]
          %v1636 = vld [vmem:[#allocation2 + $0x78] sm:$0xff]
          %v1637 = vld [vmem:[#allocation8] sm:$0xff]
          %v1638 = vld [vmem:[#allocation8 + $0x8] sm:$0xff]
          %v1639 = vld [vmem:[#allocation8 + $0x10] sm:$0xff]
          %v1640 = vld [vmem:[#allocation8 + $0x18] sm:$0xff]
          %v1641 = vld [vmem:[#allocation8 + $0x20] sm:$0xff]
          %v1642 = vld [vmem:[#allocation8 + $0x28] sm:$0xff]
          %v1643 = vld [vmem:[#allocation8 + $0x30] sm:$0xff]
          %v1644 = vld [vmem:[#allocation8 + $0x38] sm:$0xff]
          %v1645 = vld [vmem:[#allocation8 + $0x40] sm:$0xff]
          %v1646 = vld [vmem:[#allocation8 + $0x48] sm:$0xff]
          %v1647 = vld [vmem:[#allocation8 + $0x50] sm:$0xff]
          %v1648 = vld [vmem:[#allocation8 + $0x58] sm:$0xff]
          %v1649 = vld [vmem:[#allocation8 + $0x60] sm:$0xff]
          %v1650 = vld [vmem:[#allocation8 + $0x68] sm:$0xff]
          %v1651 = vld [vmem:[#allocation8 + $0x70] sm:$0xff]
          %v1652 = vld [vmem:[#allocation8 + $0x78] sm:$0xff]
          %v1653 = vld [vmem:[#allocation8 + $0x80] sm:$0xff]
          %v1654 = vld [vmem:[#allocation8 + $0x88] sm:$0xff]
          %v1655 = vld [vmem:[#allocation8 + $0x90] sm:$0xff]
          %v1656 = vld [vmem:[#allocation8 + $0x98] sm:$0xff]
          %v1657 = vld [vmem:[#allocation8 + $0xa0] sm:$0xff]
          %v1658 = vld [vmem:[#allocation8 + $0xa8] sm:$0xff]
          %v1659 = vld [vmem:[#allocation8 + $0xb0] sm:$0xff]
          %v1660 = vld [vmem:[#allocation8 + $0xb8] sm:$0xff]
          %v1661 = vld [vmem:[#allocation8 + $0xc0] sm:$0xff]
          %v1662 = vld [vmem:[#allocation8 + $0xc8] sm:$0xff]
          %v1663 = vld [vmem:[#allocation8 + $0xd0] sm:$0xff]
          %v1664 = vld [vmem:[#allocation8 + $0xd8] sm:$0xff]
          %v1665 = vld [vmem:[#allocation8 + $0xe0] sm:$0xff]
          %v1666 = vld [vmem:[#allocation8 + $0xe8] sm:$0xff]
          %v1667 = vld [vmem:[#allocation8 + $0xf0] sm:$0xff]
          %v1668 = vld [vmem:[#allocation8 + $0xf8] sm:$0xff]
          %v1669 = vld [vmem:[#allocation8 + $0x100] sm:$0xff]
          %v1670 = vld [vmem:[#allocation8 + $0x108] sm:$0xff]
          %v1671 = vld [vmem:[#allocation8 + $0x110] sm:$0xff]
          %v1672 = vld [vmem:[#allocation8 + $0x118] sm:$0xff]
          %v1673 = vld [vmem:[#allocation8 + $0x120] sm:$0xff]
          %v1674 = vld [vmem:[#allocation8 + $0x128] sm:$0xff]
          %v1675 = vld [vmem:[#allocation8 + $0x130] sm:$0xff]
          %v1676 = vld [vmem:[#allocation8 + $0x138] sm:$0xff]
          %v1677 = vld [vmem:[#allocation8 + $0x140] sm:$0xff]
          %v1678 = vld [vmem:[#allocation8 + $0x148] sm:$0xff]
          %v1679 = vld [vmem:[#allocation8 + $0x150] sm:$0xff]
          %v1680 = vld [vmem:[#allocation8 + $0x158] sm:$0xff]
          %v1681 = vld [vmem:[#allocation8 + $0x160] sm:$0xff]
          %v1682 = vld [vmem:[#allocation8 + $0x168] sm:$0xff]
          %v1683 = vld [vmem:[#allocation8 + $0x170] sm:$0xff]
          %v1684 = vld [vmem:[#allocation8 + $0x178] sm:$0xff]
          %v1685 = vld [vmem:[#allocation8 + $0x180] sm:$0xff]
          %v1686 = vld [vmem:[#allocation8 + $0x188] sm:$0xff]
          %v1687 = vld [vmem:[#allocation8 + $0x190] sm:$0xff]
          %v1688 = vld [vmem:[#allocation8 + $0x198] sm:$0xff]
          %v1689 = vld [vmem:[#allocation8 + $0x1a0] sm:$0xff]
          %v1690 = vld [vmem:[#allocation8 + $0x1a8] sm:$0xff]
          %v1691 = vld [vmem:[#allocation8 + $0x1b0] sm:$0xff]
          %v1692 = vld [vmem:[#allocation8 + $0x1b8] sm:$0xff]
          %v1693 = vld [vmem:[#allocation8 + $0x1c0] sm:$0xff]
          %v1694 = vld [vmem:[#allocation8 + $0x1c8] sm:$0xff]
          %v1695 = vld [vmem:[#allocation8 + $0x1d0] sm:$0xff]
          %v1696 = vld [vmem:[#allocation8 + $0x1d8] sm:$0xff]
          %v1697 = vld [vmem:[#allocation8 + $0x1e0] sm:$0xff]
          %v1698 = vld [vmem:[#allocation8 + $0x1e8] sm:$0xff]
          %v1699 = vld [vmem:[#allocation8 + $0x1f0] sm:$0xff]
          %v1700 = vld [vmem:[#allocation8 + $0x1f8] sm:$0xff]
          %v1701 = vld [vmem:[#allocation8 + $0x200] sm:$0xff]
          %v1702 = vld [vmem:[#allocation8 + $0x208] sm:$0xff]
          %v1703 = vld [vmem:[#allocation8 + $0x210] sm:$0xff]
          %v1704 = vld [vmem:[#allocation8 + $0x218] sm:$0xff]
          %v1705 = vld [vmem:[#allocation8 + $0x220] sm:$0xff]
          %v1706 = vld [vmem:[#allocation8 + $0x228] sm:$0xff]
          %v1707 = vld [vmem:[#allocation8 + $0x230] sm:$0xff]
          %v1708 = vld [vmem:[#allocation8 + $0x238] sm:$0xff]
          %v1709 = vld [vmem:[#allocation8 + $0x240] sm:$0xff]
          %v1710 = vld [vmem:[#allocation8 + $0x248] sm:$0xff]
          %v1711 = vld [vmem:[#allocation8 + $0x250] sm:$0xff]
          %v1712 = vld [vmem:[#allocation8 + $0x258] sm:$0xff]
          %v1713 = vld [vmem:[#allocation8 + $0x260] sm:$0xff]
          %v1714 = vld [vmem:[#allocation8 + $0x268] sm:$0xff]
          %v1715 = vld [vmem:[#allocation8 + $0x270] sm:$0xff]
          %v1716 = vld [vmem:[#allocation8 + $0x278] sm:$0xff]
          %v1717 = vld [vmem:[#allocation8 + $0x280] sm:$0xff]
          %v1718 = vld [vmem:[#allocation8 + $0x288] sm:$0xff]
          %v1719 = vld [vmem:[#allocation8 + $0x290] sm:$0xff]
          %v1720 = vld [vmem:[#allocation8 + $0x298] sm:$0xff]
          %v1721 = vld [vmem:[#allocation8 + $0x2a0] sm:$0xff]
          %v1722 = vld [vmem:[#allocation8 + $0x2a8] sm:$0xff]
          %v1723 = vld [vmem:[#allocation8 + $0x2b0] sm:$0xff]
          %v1724 = vld [vmem:[#allocation8 + $0x2b8] sm:$0xff]
          %v1725 = vld [vmem:[#allocation8 + $0x2c0] sm:$0xff]
          %v1726 = vld [vmem:[#allocation8 + $0x2c8] sm:$0xff]
          %v1727 = vld [vmem:[#allocation8 + $0x2d0] sm:$0xff]
          %v1728 = vld [vmem:[#allocation8 + $0x2d8] sm:$0xff]
          %v1729 = vld [vmem:[#allocation8 + $0x2e0] sm:$0xff]
          %v1730 = vld [vmem:[#allocation8 + $0x2e8] sm:$0xff]
          %v1731 = vld [vmem:[#allocation8 + $0x2f0] sm:$0xff]
          %v1732 = vld [vmem:[#allocation8 + $0x2f8] sm:$0xff]
          %v1733 = vld [vmem:[#allocation8 + $0x300] sm:$0xff]
          %v1734 = vld [vmem:[#allocation8 + $0x308] sm:$0xff]
          %v1735 = vld [vmem:[#allocation8 + $0x310] sm:$0xff]
          %v1736 = vld [vmem:[#allocation8 + $0x318] sm:$0xff]
          %v1737 = vld [vmem:[#allocation8 + $0x320] sm:$0xff]
          %v1738 = vld [vmem:[#allocation8 + $0x328] sm:$0xff]
          %v1739 = vld [vmem:[#allocation8 + $0x330] sm:$0xff]
          %v1740 = vld [vmem:[#allocation8 + $0x338] sm:$0xff]
          %v1741 = vld [vmem:[#allocation8 + $0x340] sm:$0xff]
          %v1742 = vld [vmem:[#allocation8 + $0x348] sm:$0xff]
          %v1743 = vld [vmem:[#allocation8 + $0x350] sm:$0xff]
          %v1744 = vld [vmem:[#allocation8 + $0x358] sm:$0xff]
          %v1745 = vld [vmem:[#allocation8 + $0x360] sm:$0xff]
          %v1746 = vld [vmem:[#allocation8 + $0x368] sm:$0xff]
          %v1747 = vld [vmem:[#allocation8 + $0x370] sm:$0xff]
          %v1748 = vld [vmem:[#allocation8 + $0x378] sm:$0xff]
          %v1749 = vld [vmem:[#allocation8 + $0x380] sm:$0xff]
          %v1750 = vld [vmem:[#allocation8 + $0x388] sm:$0xff]
          %v1751 = vld [vmem:[#allocation8 + $0x390] sm:$0xff]
          %v1752 = vld [vmem:[#allocation8 + $0x398] sm:$0xff]
          %v1753 = vld [vmem:[#allocation8 + $0x3a0] sm:$0xff]
          %v1754 = vld [vmem:[#allocation8 + $0x3a8] sm:$0xff]
          %v1755 = vld [vmem:[#allocation8 + $0x3b0] sm:$0xff]
          %v1756 = vld [vmem:[#allocation8 + $0x3b8] sm:$0xff]
          %v1757 = vld [vmem:[#allocation8 + $0x3c0] sm:$0xff]
          %v1758 = vld [vmem:[#allocation8 + $0x3c8] sm:$0xff]
          %v1759 = vld [vmem:[#allocation8 + $0x3d0] sm:$0xff]
          %v1760 = vld [vmem:[#allocation8 + $0x3d8] sm:$0xff]
          %v1761 = vld [vmem:[#allocation8 + $0x3e0] sm:$0xff]
          %v1762 = vld [vmem:[#allocation8 + $0x3e8] sm:$0xff]
          %v1763 = vld [vmem:[#allocation8 + $0x3f0] sm:$0xff]
          %v1764 = vld [vmem:[#allocation8 + $0x3f8] sm:$0xff]
          %v1765 = vld [vmem:[#allocation9] sm:$0xf]
          %v1767 = vlaneseq
          %v1768 = vshrl.u32 %v1767, 7
          %v1769 = vsub.s32 0, %v1768
          %v1770 = vrot.slane %v1765, %v1769
          %v1771 = vlaneseq
          %v1772 = vshrl.u32 %v1771, 7
          %v1773 = vsub.s32 1, %v1772
          %v1774 = vrot.slane %v1765, %v1773
          %v1775 = vlaneseq
          %v1776 = vshrl.u32 %v1775, 7
          %v1777 = vsub.s32 2, %v1776
          %v1778 = vrot.slane %v1765, %v1777
          %v1779 = vlaneseq
          %v1780 = vshrl.u32 %v1779, 7
          %v1781 = vsub.s32 3, %v1780
          %v1782 = vrot.slane %v1765, %v1781
          %v1915 = vunpack.c.l.b16 %v1637
          %v1916 = vunpack.c.h.b16 %v1637
          %v1917 = vunpack.c.l.b16 %v1638
          %v1918 = vunpack.c.h.b16 %v1638
          %v1919 = vunpack.c.l.b16 %v1639
          %v1920 = vunpack.c.h.b16 %v1639
          %v1921 = vunpack.c.l.b16 %v1640
          %v1922 = vunpack.c.h.b16 %v1640
          %v1923 = vunpack.c.l.b16 %v1641
          %v1924 = vunpack.c.h.b16 %v1641
          %v1925 = vunpack.c.l.b16 %v1642
          %v1926 = vunpack.c.h.b16 %v1642
          %v1927 = vunpack.c.l.b16 %v1643
          %v1928 = vunpack.c.h.b16 %v1643
          %v1929 = vunpack.c.l.b16 %v1644
          %v1930 = vunpack.c.h.b16 %v1644
          %v1931 = vunpack.c.l.b16 %v1645
          %v1932 = vunpack.c.h.b16 %v1645
          %v1933 = vunpack.c.l.b16 %v1646
          %v1934 = vunpack.c.h.b16 %v1646
          %v1935 = vunpack.c.l.b16 %v1647
          %v1936 = vunpack.c.h.b16 %v1647
          %v1937 = vunpack.c.l.b16 %v1648
          %v1938 = vunpack.c.h.b16 %v1648
          %v1939 = vunpack.c.l.b16 %v1649
          %v1940 = vunpack.c.h.b16 %v1649
          %v1941 = vunpack.c.l.b16 %v1650
          %v1942 = vunpack.c.h.b16 %v1650
          %v1943 = vunpack.c.l.b16 %v1651
          %v1944 = vunpack.c.h.b16 %v1651
          %v1945 = vunpack.c.l.b16 %v1652
          %v1946 = vunpack.c.h.b16 %v1652
          %v1947 = vunpack.c.l.b16 %v1653
          %v1948 = vunpack.c.h.b16 %v1653
          %v1949 = vunpack.c.l.b16 %v1654
          %v1950 = vunpack.c.h.b16 %v1654
          %v1951 = vunpack.c.l.b16 %v1655
          %v1952 = vunpack.c.h.b16 %v1655
          %v1953 = vunpack.c.l.b16 %v1656
          %v1954 = vunpack.c.h.b16 %v1656
          %v1955 = vunpack.c.l.b16 %v1657
          %v1956 = vunpack.c.h.b16 %v1657
          %v1957 = vunpack.c.l.b16 %v1658
          %v1958 = vunpack.c.h.b16 %v1658
          %v1959 = vunpack.c.l.b16 %v1659
          %v1960 = vunpack.c.h.b16 %v1659
          %v1961 = vunpack.c.l.b16 %v1660
          %v1962 = vunpack.c.h.b16 %v1660
          %v1963 = vunpack.c.l.b16 %v1661
          %v1964 = vunpack.c.h.b16 %v1661
          %v1965 = vunpack.c.l.b16 %v1662
          %v1966 = vunpack.c.h.b16 %v1662
          %v1967 = vunpack.c.l.b16 %v1663
          %v1968 = vunpack.c.h.b16 %v1663
          %v1969 = vunpack.c.l.b16 %v1664
          %v1970 = vunpack.c.h.b16 %v1664
          %v1971 = vunpack.c.l.b16 %v1665
          %v1972 = vunpack.c.h.b16 %v1665
          %v1973 = vunpack.c.l.b16 %v1666
          %v1974 = vunpack.c.h.b16 %v1666
          %v1975 = vunpack.c.l.b16 %v1667
          %v1976 = vunpack.c.h.b16 %v1667
          %v1977 = vunpack.c.l.b16 %v1668
          %v1978 = vunpack.c.h.b16 %v1668
          %v1979 = vunpack.c.l.b16 %v1669
          %v1980 = vunpack.c.h.b16 %v1669
          %v1981 = vunpack.c.l.b16 %v1670
          %v1982 = vunpack.c.h.b16 %v1670
          %v1983 = vunpack.c.l.b16 %v1671
          %v1984 = vunpack.c.h.b16 %v1671
          %v1985 = vunpack.c.l.b16 %v1672
          %v1986 = vunpack.c.h.b16 %v1672
          %v1987 = vunpack.c.l.b16 %v1673
          %v1988 = vunpack.c.h.b16 %v1673
          %v1989 = vunpack.c.l.b16 %v1674
          %v1990 = vunpack.c.h.b16 %v1674
          %v1991 = vunpack.c.l.b16 %v1675
          %v1992 = vunpack.c.h.b16 %v1675
          %v1993 = vunpack.c.l.b16 %v1676
          %v1994 = vunpack.c.h.b16 %v1676
          %v1995 = vunpack.c.l.b16 %v1677
          %v1996 = vunpack.c.h.b16 %v1677
          %v1997 = vunpack.c.l.b16 %v1678
          %v1998 = vunpack.c.h.b16 %v1678
          %v1999 = vunpack.c.l.b16 %v1679
          %v2000 = vunpack.c.h.b16 %v1679
          %v2001 = vunpack.c.l.b16 %v1680
          %v2002 = vunpack.c.h.b16 %v1680
          %v2003 = vunpack.c.l.b16 %v1681
          %v2004 = vunpack.c.h.b16 %v1681
          %v2005 = vunpack.c.l.b16 %v1682
          %v2006 = vunpack.c.h.b16 %v1682
          %v2007 = vunpack.c.l.b16 %v1683
          %v2008 = vunpack.c.h.b16 %v1683
          %v2009 = vunpack.c.l.b16 %v1684
          %v2010 = vunpack.c.h.b16 %v1684
          %v2011 = vunpack.c.l.b16 %v1685
          %v2012 = vunpack.c.h.b16 %v1685
          %v2013 = vunpack.c.l.b16 %v1686
          %v2014 = vunpack.c.h.b16 %v1686
          %v2015 = vunpack.c.l.b16 %v1687
          %v2016 = vunpack.c.h.b16 %v1687
          %v2017 = vunpack.c.l.b16 %v1688
          %v2018 = vunpack.c.h.b16 %v1688
          %v2019 = vunpack.c.l.b16 %v1689
          %v2020 = vunpack.c.h.b16 %v1689
          %v2021 = vunpack.c.l.b16 %v1690
          %v2022 = vunpack.c.h.b16 %v1690
          %v2023 = vunpack.c.l.b16 %v1691
          %v2024 = vunpack.c.h.b16 %v1691
          %v2025 = vunpack.c.l.b16 %v1692
          %v2026 = vunpack.c.h.b16 %v1692
          %v2027 = vunpack.c.l.b16 %v1693
          %v2028 = vunpack.c.h.b16 %v1693
          %v2029 = vunpack.c.l.b16 %v1694
          %v2030 = vunpack.c.h.b16 %v1694
          %v2031 = vunpack.c.l.b16 %v1695
          %v2032 = vunpack.c.h.b16 %v1695
          %v2033 = vunpack.c.l.b16 %v1696
          %v2034 = vunpack.c.h.b16 %v1696
          %v2035 = vunpack.c.l.b16 %v1697
          %v2036 = vunpack.c.h.b16 %v1697
          %v2037 = vunpack.c.l.b16 %v1698
          %v2038 = vunpack.c.h.b16 %v1698
          %v2039 = vunpack.c.l.b16 %v1699
          %v2040 = vunpack.c.h.b16 %v1699
          %v2041 = vunpack.c.l.b16 %v1700
          %v2042 = vunpack.c.h.b16 %v1700
          %v2043 = vunpack.c.l.b16 %v1701
          %v2044 = vunpack.c.h.b16 %v1701
          %v2045 = vunpack.c.l.b16 %v1702
          %v2046 = vunpack.c.h.b16 %v1702
          %v2047 = vunpack.c.l.b16 %v1703
          %v2048 = vunpack.c.h.b16 %v1703
          %v2049 = vunpack.c.l.b16 %v1704
          %v2050 = vunpack.c.h.b16 %v1704
          %v2051 = vunpack.c.l.b16 %v1705
          %v2052 = vunpack.c.h.b16 %v1705
          %v2053 = vunpack.c.l.b16 %v1706
          %v2054 = vunpack.c.h.b16 %v1706
          %v2055 = vunpack.c.l.b16 %v1707
          %v2056 = vunpack.c.h.b16 %v1707
          %v2057 = vunpack.c.l.b16 %v1708
          %v2058 = vunpack.c.h.b16 %v1708
          %v2059 = vunpack.c.l.b16 %v1709
          %v2060 = vunpack.c.h.b16 %v1709
          %v2061 = vunpack.c.l.b16 %v1710
          %v2062 = vunpack.c.h.b16 %v1710
          %v2063 = vunpack.c.l.b16 %v1711
          %v2064 = vunpack.c.h.b16 %v1711
          %v2065 = vunpack.c.l.b16 %v1712
          %v2066 = vunpack.c.h.b16 %v1712
          %v2067 = vunpack.c.l.b16 %v1713
          %v2068 = vunpack.c.h.b16 %v1713
          %v2069 = vunpack.c.l.b16 %v1714
          %v2070 = vunpack.c.h.b16 %v1714
          %v2071 = vunpack.c.l.b16 %v1715
          %v2072 = vunpack.c.h.b16 %v1715
          %v2073 = vunpack.c.l.b16 %v1716
          %v2074 = vunpack.c.h.b16 %v1716
          %v2075 = vunpack.c.l.b16 %v1717
          %v2076 = vunpack.c.h.b16 %v1717
          %v2077 = vunpack.c.l.b16 %v1718
          %v2078 = vunpack.c.h.b16 %v1718
          %v2079 = vunpack.c.l.b16 %v1719
          %v2080 = vunpack.c.h.b16 %v1719
          %v2081 = vunpack.c.l.b16 %v1720
          %v2082 = vunpack.c.h.b16 %v1720
          %v2083 = vunpack.c.l.b16 %v1721
          %v2084 = vunpack.c.h.b16 %v1721
          %v2085 = vunpack.c.l.b16 %v1722
          %v2086 = vunpack.c.h.b16 %v1722
          %v2087 = vunpack.c.l.b16 %v1723
          %v2088 = vunpack.c.h.b16 %v1723
          %v2089 = vunpack.c.l.b16 %v1724
          %v2090 = vunpack.c.h.b16 %v1724
          %v2091 = vunpack.c.l.b16 %v1725
          %v2092 = vunpack.c.h.b16 %v1725
          %v2093 = vunpack.c.l.b16 %v1726
          %v2094 = vunpack.c.h.b16 %v1726
          %v2095 = vunpack.c.l.b16 %v1727
          %v2096 = vunpack.c.h.b16 %v1727
          %v2097 = vunpack.c.l.b16 %v1728
          %v2098 = vunpack.c.h.b16 %v1728
          %v2099 = vunpack.c.l.b16 %v1729
          %v2100 = vunpack.c.h.b16 %v1729
          %v2101 = vunpack.c.l.b16 %v1730
          %v2102 = vunpack.c.h.b16 %v1730
          %v2103 = vunpack.c.l.b16 %v1731
          %v2104 = vunpack.c.h.b16 %v1731
          %v2105 = vunpack.c.l.b16 %v1732
          %v2106 = vunpack.c.h.b16 %v1732
          %v2107 = vunpack.c.l.b16 %v1733
          %v2108 = vunpack.c.h.b16 %v1733
          %v2109 = vunpack.c.l.b16 %v1734
          %v2110 = vunpack.c.h.b16 %v1734
          %v2111 = vunpack.c.l.b16 %v1735
          %v2112 = vunpack.c.h.b16 %v1735
          %v2113 = vunpack.c.l.b16 %v1736
          %v2114 = vunpack.c.h.b16 %v1736
          %v2115 = vunpack.c.l.b16 %v1737
          %v2116 = vunpack.c.h.b16 %v1737
          %v2117 = vunpack.c.l.b16 %v1738
          %v2118 = vunpack.c.h.b16 %v1738
          %v2119 = vunpack.c.l.b16 %v1739
          %v2120 = vunpack.c.h.b16 %v1739
          %v2121 = vunpack.c.l.b16 %v1740
          %v2122 = vunpack.c.h.b16 %v1740
          %v2123 = vunpack.c.l.b16 %v1741
          %v2124 = vunpack.c.h.b16 %v1741
          %v2125 = vunpack.c.l.b16 %v1742
          %v2126 = vunpack.c.h.b16 %v1742
          %v2127 = vunpack.c.l.b16 %v1743
          %v2128 = vunpack.c.h.b16 %v1743
          %v2129 = vunpack.c.l.b16 %v1744
          %v2130 = vunpack.c.h.b16 %v1744
          %v2131 = vunpack.c.l.b16 %v1745
          %v2132 = vunpack.c.h.b16 %v1745
          %v2133 = vunpack.c.l.b16 %v1746
          %v2134 = vunpack.c.h.b16 %v1746
          %v2135 = vunpack.c.l.b16 %v1747
          %v2136 = vunpack.c.h.b16 %v1747
          %v2137 = vunpack.c.l.b16 %v1748
          %v2138 = vunpack.c.h.b16 %v1748
          %v2139 = vunpack.c.l.b16 %v1749
          %v2140 = vunpack.c.h.b16 %v1749
          %v2141 = vunpack.c.l.b16 %v1750
          %v2142 = vunpack.c.h.b16 %v1750
          %v2143 = vunpack.c.l.b16 %v1751
          %v2144 = vunpack.c.h.b16 %v1751
          %v2145 = vunpack.c.l.b16 %v1752
          %v2146 = vunpack.c.h.b16 %v1752
          %v2147 = vunpack.c.l.b16 %v1753
          %v2148 = vunpack.c.h.b16 %v1753
          %v2149 = vunpack.c.l.b16 %v1754
          %v2150 = vunpack.c.h.b16 %v1754
          %v2151 = vunpack.c.l.b16 %v1755
          %v2152 = vunpack.c.h.b16 %v1755
          %v2153 = vunpack.c.l.b16 %v1756
          %v2154 = vunpack.c.h.b16 %v1756
          %v2155 = vunpack.c.l.b16 %v1757
          %v2156 = vunpack.c.h.b16 %v1757
          %v2157 = vunpack.c.l.b16 %v1758
          %v2158 = vunpack.c.h.b16 %v1758
          %v2159 = vunpack.c.l.b16 %v1759
          %v2160 = vunpack.c.h.b16 %v1759
          %v2161 = vunpack.c.l.b16 %v1760
          %v2162 = vunpack.c.h.b16 %v1760
          %v2163 = vunpack.c.l.b16 %v1761
          %v2164 = vunpack.c.h.b16 %v1761
          %v2165 = vunpack.c.l.b16 %v1762
          %v2166 = vunpack.c.h.b16 %v1762
          %v2167 = vunpack.c.l.b16 %v1763
          %v2168 = vunpack.c.h.b16 %v1763
          %v2169 = vunpack.c.l.b16 %v1764
          %v2170 = vunpack.c.h.b16 %v1764
          %v2171 = vpack.c.b16 %v1919, %v1915
          %v2172 = vpack.c.b16 %v1920, %v1916
          %v2173 = vpack.c.b16 %v1921, %v1917
          %v2174 = vpack.c.b16 %v1922, %v1918
          %v2175 = vpack.c.b16 %v1927, %v1923
          %v2176 = vpack.c.b16 %v1928, %v1924
          %v2177 = vpack.c.b16 %v1929, %v1925
          %v2178 = vpack.c.b16 %v1930, %v1926
          %v2179 = vpack.c.b16 %v1935, %v1931
          %v2180 = vpack.c.b16 %v1936, %v1932
          %v2181 = vpack.c.b16 %v1937, %v1933
          %v2182 = vpack.c.b16 %v1938, %v1934
          %v2183 = vpack.c.b16 %v1943, %v1939
          %v2184 = vpack.c.b16 %v1944, %v1940
          %v2185 = vpack.c.b16 %v1945, %v1941
          %v2186 = vpack.c.b16 %v1946, %v1942
          %v2187 = vpack.c.b16 %v1951, %v1947
          %v2188 = vpack.c.b16 %v1952, %v1948
          %v2189 = vpack.c.b16 %v1953, %v1949
          %v2190 = vpack.c.b16 %v1954, %v1950
          %v2191 = vpack.c.b16 %v1959, %v1955
          %v2192 = vpack.c.b16 %v1960, %v1956
          %v2193 = vpack.c.b16 %v1961, %v1957
          %v2194 = vpack.c.b16 %v1962, %v1958
          %v2195 = vpack.c.b16 %v1967, %v1963
          %v2196 = vpack.c.b16 %v1968, %v1964
          %v2197 = vpack.c.b16 %v1969, %v1965
          %v2198 = vpack.c.b16 %v1970, %v1966
          %v2199 = vpack.c.b16 %v1975, %v1971
          %v2200 = vpack.c.b16 %v1976, %v1972
          %v2201 = vpack.c.b16 %v1977, %v1973
          %v2202 = vpack.c.b16 %v1978, %v1974
          %v2203 = vpack.c.b16 %v1983, %v1979
          %v2204 = vpack.c.b16 %v1984, %v1980
          %v2205 = vpack.c.b16 %v1985, %v1981
          %v2206 = vpack.c.b16 %v1986, %v1982
          %v2207 = vpack.c.b16 %v1991, %v1987
          %v2208 = vpack.c.b16 %v1992, %v1988
          %v2209 = vpack.c.b16 %v1993, %v1989
          %v2210 = vpack.c.b16 %v1994, %v1990
          %v2211 = vpack.c.b16 %v1999, %v1995
          %v2212 = vpack.c.b16 %v2000, %v1996
          %v2213 = vpack.c.b16 %v2001, %v1997
          %v2214 = vpack.c.b16 %v2002, %v1998
          %v2215 = vpack.c.b16 %v2007, %v2003
          %v2216 = vpack.c.b16 %v2008, %v2004
          %v2217 = vpack.c.b16 %v2009, %v2005
          %v2218 = vpack.c.b16 %v2010, %v2006
          %v2219 = vpack.c.b16 %v2015, %v2011
          %v2220 = vpack.c.b16 %v2016, %v2012
          %v2221 = vpack.c.b16 %v2017, %v2013
          %v2222 = vpack.c.b16 %v2018, %v2014
          %v2223 = vpack.c.b16 %v2023, %v2019
          %v2224 = vpack.c.b16 %v2024, %v2020
          %v2225 = vpack.c.b16 %v2025, %v2021
          %v2226 = vpack.c.b16 %v2026, %v2022
          %v2227 = vpack.c.b16 %v2031, %v2027
          %v2228 = vpack.c.b16 %v2032, %v2028
          %v2229 = vpack.c.b16 %v2033, %v2029
          %v2230 = vpack.c.b16 %v2034, %v2030
          %v2231 = vpack.c.b16 %v2039, %v2035
          %v2232 = vpack.c.b16 %v2040, %v2036
          %v2233 = vpack.c.b16 %v2041, %v2037
          %v2234 = vpack.c.b16 %v2042, %v2038
          %v2235 = vpack.c.b16 %v2047, %v2043
          %v2236 = vpack.c.b16 %v2048, %v2044
          %v2237 = vpack.c.b16 %v2049, %v2045
          %v2238 = vpack.c.b16 %v2050, %v2046
          %v2239 = vpack.c.b16 %v2055, %v2051
          %v2240 = vpack.c.b16 %v2056, %v2052
          %v2241 = vpack.c.b16 %v2057, %v2053
          %v2242 = vpack.c.b16 %v2058, %v2054
          %v2243 = vpack.c.b16 %v2063, %v2059
          %v2244 = vpack.c.b16 %v2064, %v2060
          %v2245 = vpack.c.b16 %v2065, %v2061
          %v2246 = vpack.c.b16 %v2066, %v2062
          %v2247 = vpack.c.b16 %v2071, %v2067
          %v2248 = vpack.c.b16 %v2072, %v2068
          %v2249 = vpack.c.b16 %v2073, %v2069
          %v2250 = vpack.c.b16 %v2074, %v2070
          %v2251 = vpack.c.b16 %v2079, %v2075
          %v2252 = vpack.c.b16 %v2080, %v2076
          %v2253 = vpack.c.b16 %v2081, %v2077
          %v2254 = vpack.c.b16 %v2082, %v2078
          %v2255 = vpack.c.b16 %v2087, %v2083
          %v2256 = vpack.c.b16 %v2088, %v2084
          %v2257 = vpack.c.b16 %v2089, %v2085
          %v2258 = vpack.c.b16 %v2090, %v2086
          %v2259 = vpack.c.b16 %v2095, %v2091
          %v2260 = vpack.c.b16 %v2096, %v2092
          %v2261 = vpack.c.b16 %v2097, %v2093
          %v2262 = vpack.c.b16 %v2098, %v2094
          %v2263 = vpack.c.b16 %v2103, %v2099
          %v2264 = vpack.c.b16 %v2104, %v2100
          %v2265 = vpack.c.b16 %v2105, %v2101
          %v2266 = vpack.c.b16 %v2106, %v2102
          %v2267 = vpack.c.b16 %v2111, %v2107
          %v2268 = vpack.c.b16 %v2112, %v2108
          %v2269 = vpack.c.b16 %v2113, %v2109
          %v2270 = vpack.c.b16 %v2114, %v2110
          %v2271 = vpack.c.b16 %v2119, %v2115
          %v2272 = vpack.c.b16 %v2120, %v2116
          %v2273 = vpack.c.b16 %v2121, %v2117
          %v2274 = vpack.c.b16 %v2122, %v2118
          %v2275 = vpack.c.b16 %v2127, %v2123
          %v2276 = vpack.c.b16 %v2128, %v2124
          %v2277 = vpack.c.b16 %v2129, %v2125
          %v2278 = vpack.c.b16 %v2130, %v2126
          %v2279 = vpack.c.b16 %v2135, %v2131
          %v2280 = vpack.c.b16 %v2136, %v2132
          %v2281 = vpack.c.b16 %v2137, %v2133
          %v2282 = vpack.c.b16 %v2138, %v2134
          %v2283 = vpack.c.b16 %v2143, %v2139
          %v2284 = vpack.c.b16 %v2144, %v2140
          %v2285 = vpack.c.b16 %v2145, %v2141
          %v2286 = vpack.c.b16 %v2146, %v2142
          %v2287 = vpack.c.b16 %v2151, %v2147
          %v2288 = vpack.c.b16 %v2152, %v2148
          %v2289 = vpack.c.b16 %v2153, %v2149
          %v2290 = vpack.c.b16 %v2154, %v2150
          %v2291 = vpack.c.b16 %v2159, %v2155
          %v2292 = vpack.c.b16 %v2160, %v2156
          %v2293 = vpack.c.b16 %v2161, %v2157
          %v2294 = vpack.c.b16 %v2162, %v2158
          %v2295 = vpack.c.b16 %v2167, %v2163
          %v2296 = vpack.c.b16 %v2168, %v2164
          %v2297 = vpack.c.b16 %v2169, %v2165
          %v2298 = vpack.c.b16 %v2170, %v2166
          %2427 = vmatprep.subr.bf16.mxu0 %v2172
          %2428 = vmatpush1.bf16.msra.mxu0 %v2171
          %2429 = vmatprep.subr.bf16.mxu0 %v2176
          %2430 = vmatpush1.bf16.msra.mxu0 %v2175
          %2431 = vmatprep.subr.bf16.mxu0 %v2180
          %2432 = vmatpush1.bf16.msra.mxu0 %v2179
          %2433 = vmatprep.subr.bf16.mxu0 %v2184
          %2434 = vmatpush1.bf16.msra.mxu0 %v2183
          %2435 = vmatprep.subr.bf16.mxu0 %v2188
          %2436 = vmatpush1.bf16.msra.mxu0 %v2187
          %2437 = vmatprep.subr.bf16.mxu0 %v2192
          %2438 = vmatpush1.bf16.msra.mxu0 %v2191
          %2439 = vmatprep.subr.bf16.mxu0 %v2196
          %2440 = vmatpush1.bf16.msra.mxu0 %v2195
          %2441 = vmatprep.subr.bf16.mxu0 %v2200
          %2442 = vmatpush1.bf16.msra.mxu0 %v2199
          %2443 = vmatprep.subr.bf16.mxu0 %v2204
          %2444 = vmatpush1.bf16.msra.mxu0 %v2203
          %2445 = vmatprep.subr.bf16.mxu0 %v2208
          %2446 = vmatpush1.bf16.msra.mxu0 %v2207
          %2447 = vmatprep.subr.bf16.mxu0 %v2212
          %2448 = vmatpush1.bf16.msra.mxu0 %v2211
          %2449 = vmatprep.subr.bf16.mxu0 %v2216
          %2450 = vmatpush1.bf16.msra.mxu0 %v2215
          %2451 = vmatprep.subr.bf16.mxu0 %v2220
          %2452 = vmatpush1.bf16.msra.mxu0 %v2219
          %2453 = vmatprep.subr.bf16.mxu0 %v2224
          %2454 = vmatpush1.bf16.msra.mxu0 %v2223
          %2455 = vmatprep.subr.bf16.mxu0 %v2228
          %2456 = vmatpush1.bf16.msra.mxu0 %v2227
          %2457 = vmatprep.subr.bf16.mxu0 %v2232
          %2458 = vmatpush1.bf16.msra.mxu0 %v2231
          %2459 = vmatprep.mubr.bf16.mxu0 %v1622
          %2460 = vmatmul.mubr.bf16.gmra.mrb[0].mxu0 %v1621
          %v2461 = vpop.f32.mrb[0].mxu0
          %v2462 = vadd.f32 %v1770, %v2461
          %v2463 = vpop.f32.mrb[0].mxu0
          %v2464 = vadd.f32 %v1774, %v2463
          %v2465 = vpop.f32.mrb[0].mxu0
          %v2466 = vadd.f32 %v1770, %v2465
          %v2467 = vpop.f32.mrb[0].mxu0
          %v2468 = vadd.f32 %v1774, %v2467
          %2469 = vmatprep.mubr.bf16.mxu0 %v1626
          %2470 = vmatmul.mubr.bf16.gmra.mrb[0].mxu0 %v1625
          %v2471 = vpop.f32.mrb[0].mxu0
          %v2472 = vadd.f32 %v1770, %v2471
          %v2473 = vpop.f32.mrb[0].mxu0
          %v2474 = vadd.f32 %v1774, %v2473
          %v2475 = vpop.f32.mrb[0].mxu0
          %v2476 = vadd.f32 %v1770, %v2475
          %v2477 = vpop.f32.mrb[0].mxu0
          %v2478 = vadd.f32 %v1774, %v2477
          %2479 = vmatprep.mubr.bf16.mxu0 %v1630
          %2480 = vmatmul.mubr.bf16.gmra.mrb[0].mxu0 %v1629
          %v2481 = vpop.f32.mrb[0].mxu0
          %v2482 = vadd.f32 %v1770, %v2481
          %v2483 = vpop.f32.mrb[0].mxu0
          %v2484 = vadd.f32 %v1774, %v2483
          %v2485 = vpop.f32.mrb[0].mxu0
          %v2486 = vadd.f32 %v1770, %v2485
          %v2487 = vpop.f32.mrb[0].mxu0
          %v2488 = vadd.f32 %v1774, %v2487
          %2489 = vmatprep.mubr.bf16.mxu0 %v1634
          %2490 = vmatmul.mubr.bf16.gmra.mrb[0].mxu0 %v1633
          %v2491 = vpop.f32.mrb[0].mxu0
          %v2492 = vadd.f32 %v1770, %v2491
          %v2493 = vpop.f32.mrb[0].mxu0
          %v2494 = vadd.f32 %v1774, %v2493
          %v2495 = vpop.f32.mrb[0].mxu0
          %v2496 = vadd.f32 %v1770, %v2495
          %v2497 = vpop.f32.mrb[0].mxu0
          %v2498 = vadd.f32 %v1774, %v2497
          %2499 = vdwg.mxu0
          %2500 = vmatprep.subr.bf16.mxu0 %v2236
          %2501 = vmatpush1.bf16.msra.mxu0 %v2235
          %2502 = vmatprep.subr.bf16.mxu0 %v2240
          %2503 = vmatpush1.bf16.msra.mxu0 %v2239
          %2504 = vmatprep.subr.bf16.mxu0 %v2244
          %2505 = vmatpush1.bf16.msra.mxu0 %v2243
          %2506 = vmatprep.subr.bf16.mxu0 %v2248
          %2507 = vmatpush1.bf16.msra.mxu0 %v2247
          %2508 = vmatprep.subr.bf16.mxu0 %v2252
          %2509 = vmatpush1.bf16.msra.mxu0 %v2251
          %2510 = vmatprep.subr.bf16.mxu0 %v2256
          %2511 = vmatpush1.bf16.msra.mxu0 %v2255
          %2512 = vmatprep.subr.bf16.mxu0 %v2260
          %2513 = vmatpush1.bf16.msra.mxu0 %v2259
          %2514 = vmatprep.subr.bf16.mxu0 %v2264
          %2515 = vmatpush1.bf16.msra.mxu0 %v2263
          %2516 = vmatprep.subr.bf16.mxu0 %v2268
          %2517 = vmatpush1.bf16.msra.mxu0 %v2267
          %2518 = vmatprep.subr.bf16.mxu0 %v2272
          %2519 = vmatpush1.bf16.msra.mxu0 %v2271
          %2520 = vmatprep.subr.bf16.mxu0 %v2276
          %2521 = vmatpush1.bf16.msra.mxu0 %v2275
          %2522 = vmatprep.subr.bf16.mxu0 %v2280
          %2523 = vmatpush1.bf16.msra.mxu0 %v2279
          %2524 = vmatprep.subr.bf16.mxu0 %v2284
          %2525 = vmatpush1.bf16.msra.mxu0 %v2283
          %2526 = vmatprep.subr.bf16.mxu0 %v2288
          %2527 = vmatpush1.bf16.msra.mxu0 %v2287
          %2528 = vmatprep.subr.bf16.mxu0 %v2292
          %2529 = vmatpush1.bf16.msra.mxu0 %v2291
          %2530 = vmatprep.subr.bf16.mxu0 %v2296
          %2531 = vmatpush1.bf16.msra.mxu0 %v2295
          %2532 = vmatprep.mubr.bf16.mxu0 %v1624
          %2533 = vmatmul.mubr.bf16.gmra.mrb[0].mxu0 %v1623
          %v2534 = vpop.f32.mrb[0].mxu0
          %v2535 = vadd.f32 %v2462, %v2534
          %v2536 = vpop.f32.mrb[0].mxu0
          %v2537 = vadd.f32 %v2464, %v2536
          %v2538 = vpop.f32.mrb[0].mxu0
          %v2539 = vadd.f32 %v2466, %v2538
          %v2540 = vpop.f32.mrb[0].mxu0
          %v2541 = vadd.f32 %v2468, %v2540
          %2542 = vmatprep.mubr.bf16.mxu0 %v1628
          %2543 = vmatmul.mubr.bf16.gmra.mrb[0].mxu0 %v1627
          %v2544 = vpop.f32.mrb[0].mxu0
          %v2545 = vadd.f32 %v2472, %v2544
          %v2546 = vpop.f32.mrb[0].mxu0
          %v2547 = vadd.f32 %v2474, %v2546
          %v2548 = vpop.f32.mrb[0].mxu0
          %v2549 = vadd.f32 %v2476, %v2548
          %v2550 = vpop.f32.mrb[0].mxu0
          %v2551 = vadd.f32 %v2478, %v2550
          %2552 = vmatprep.mubr.bf16.mxu0 %v1632
          %2553 = vmatmul.mubr.bf16.gmra.mrb[0].mxu0 %v1631
          %v2554 = vpop.f32.mrb[0].mxu0
          %v2555 = vadd.f32 %v2482, %v2554
          %v2556 = vpop.f32.mrb[0].mxu0
          %v2557 = vadd.f32 %v2484, %v2556
          %v2558 = vpop.f32.mrb[0].mxu0
          %v2559 = vadd.f32 %v2486, %v2558
          %v2560 = vpop.f32.mrb[0].mxu0
          %v2561 = vadd.f32 %v2488, %v2560
          %2562 = vmatprep.mubr.bf16.mxu0 %v1636
          %2563 = vmatmul.mubr.bf16.gmra.mrb[0].mxu0 %v1635
          %v2564 = vpop.f32.mrb[0].mxu0
          %v2565 = vadd.f32 %v2492, %v2564
          %v2566 = vpop.f32.mrb[0].mxu0
          %v2567 = vadd.f32 %v2494, %v2566
          %v2568 = vpop.f32.mrb[0].mxu0
          %v2569 = vadd.f32 %v2496, %v2568
          %v2570 = vpop.f32.mrb[0].mxu0
          %v2571 = vadd.f32 %v2498, %v2570
          %2572 = vdwg.mxu0
          %2573 = vmatprep.subr.bf16.mxu0 %v2174
          %2574 = vmatpush1.bf16.msra.mxu0 %v2173
          %2575 = vmatprep.subr.bf16.mxu0 %v2178
          %2576 = vmatpush1.bf16.msra.mxu0 %v2177
          %2577 = vmatprep.subr.bf16.mxu0 %v2182
          %2578 = vmatpush1.bf16.msra.mxu0 %v2181
          %2579 = vmatprep.subr.bf16.mxu0 %v2186
          %2580 = vmatpush1.bf16.msra.mxu0 %v2185
          %2581 = vmatprep.subr.bf16.mxu0 %v2190
          %2582 = vmatpush1.bf16.msra.mxu0 %v2189
          %2583 = vmatprep.subr.bf16.mxu0 %v2194
          %2584 = vmatpush1.bf16.msra.mxu0 %v2193
          %2585 = vmatprep.subr.bf16.mxu0 %v2198
          %2586 = vmatpush1.bf16.msra.mxu0 %v2197
          %2587 = vmatprep.subr.bf16.mxu0 %v2202
          %2588 = vmatpush1.bf16.msra.mxu0 %v2201
          %2589 = vmatprep.subr.bf16.mxu0 %v2206
          %2590 = vmatpush1.bf16.msra.mxu0 %v2205
          %2591 = vmatprep.subr.bf16.mxu0 %v2210
          %2592 = vmatpush1.bf16.msra.mxu0 %v2209
          %2593 = vmatprep.subr.bf16.mxu0 %v2214
          %2594 = vmatpush1.bf16.msra.mxu0 %v2213
          %2595 = vmatprep.subr.bf16.mxu0 %v2218
          %2596 = vmatpush1.bf16.msra.mxu0 %v2217
          %2597 = vmatprep.subr.bf16.mxu0 %v2222
          %2598 = vmatpush1.bf16.msra.mxu0 %v2221
          %2599 = vmatprep.subr.bf16.mxu0 %v2226
          %2600 = vmatpush1.bf16.msra.mxu0 %v2225
          %2601 = vmatprep.subr.bf16.mxu0 %v2230
          %2602 = vmatpush1.bf16.msra.mxu0 %v2229
          %2603 = vmatprep.subr.bf16.mxu0 %v2234
          %2604 = vmatpush1.bf16.msra.mxu0 %v2233
          %2605 = vmatprep.mubr.bf16.mxu0 %v1622
          %2606 = vmatmul.mubr.bf16.gmra.mrb[0].mxu0 %v1621
          %v2607 = vpop.f32.mrb[0].mxu0
          %v2608 = vadd.f32 %v1778, %v2607
          %v2609 = vpop.f32.mrb[0].mxu0
          %v2610 = vadd.f32 %v1782, %v2609
          %v2611 = vpop.f32.mrb[0].mxu0
          %v2612 = vadd.f32 %v1778, %v2611
          %v2613 = vpop.f32.mrb[0].mxu0
          %v2614 = vadd.f32 %v1782, %v2613
          %2615 = vmatprep.mubr.bf16.mxu0 %v1626
          %2616 = vmatmul.mubr.bf16.gmra.mrb[0].mxu0 %v1625
          %v2617 = vpop.f32.mrb[0].mxu0
          %v2618 = vadd.f32 %v1778, %v2617
          %v2619 = vpop.f32.mrb[0].mxu0
          %v2620 = vadd.f32 %v1782, %v2619
          %v2621 = vpop.f32.mrb[0].mxu0
          %v2622 = vadd.f32 %v1778, %v2621
          %v2623 = vpop.f32.mrb[0].mxu0
          %v2624 = vadd.f32 %v1782, %v2623
          %2625 = vmatprep.mubr.bf16.mxu0 %v1630
          %2626 = vmatmul.mubr.bf16.gmra.mrb[0].mxu0 %v1629
          %v2627 = vpop.f32.mrb[0].mxu0
          %v2628 = vadd.f32 %v1778, %v2627
          %v2629 = vpop.f32.mrb[0].mxu0
          %v2630 = vadd.f32 %v1782, %v2629
          %v2631 = vpop.f32.mrb[0].mxu0
          %v2632 = vadd.f32 %v1778, %v2631
          %v2633 = vpop.f32.mrb[0].mxu0
          %v2634 = vadd.f32 %v1782, %v2633
          %2635 = vmatprep.mubr.bf16.mxu0 %v1634
          %2636 = vmatmul.mubr.bf16.gmra.mrb[0].mxu0 %v1633
          %v2637 = vpop.f32.mrb[0].mxu0
          %v2638 = vadd.f32 %v1778, %v2637
          %v2639 = vpop.f32.mrb[0].mxu0
          %v2640 = vadd.f32 %v1782, %v2639
          %v2641 = vpop.f32.mrb[0].mxu0
          %v2642 = vadd.f32 %v1778, %v2641
          %v2643 = vpop.f32.mrb[0].mxu0
          %v2644 = vadd.f32 %v1782, %v2643
          %2645 = vdwg.mxu0
          %2646 = vmatprep.subr.bf16.mxu0 %v2238
          %2647 = vmatpush1.bf16.msra.mxu0 %v2237
          %2648 = vmatprep.subr.bf16.mxu0 %v2242
          %2649 = vmatpush1.bf16.msra.mxu0 %v2241
          %2650 = vmatprep.subr.bf16.mxu0 %v2246
          %2651 = vmatpush1.bf16.msra.mxu0 %v2245
          %2652 = vmatprep.subr.bf16.mxu0 %v2250
          %2653 = vmatpush1.bf16.msra.mxu0 %v2249
          %2654 = vmatprep.subr.bf16.mxu0 %v2254
          %2655 = vmatpush1.bf16.msra.mxu0 %v2253
          %2656 = vmatprep.subr.bf16.mxu0 %v2258
          %2657 = vmatpush1.bf16.msra.mxu0 %v2257
          %2658 = vmatprep.subr.bf16.mxu0 %v2262
          %2659 = vmatpush1.bf16.msra.mxu0 %v2261
          %2660 = vmatprep.subr.bf16.mxu0 %v2266
          %2661 = vmatpush1.bf16.msra.mxu0 %v2265
          %2662 = vmatprep.subr.bf16.mxu0 %v2270
          %2663 = vmatpush1.bf16.msra.mxu0 %v2269
          %2664 = vmatprep.subr.bf16.mxu0 %v2274
          %2665 = vmatpush1.bf16.msra.mxu0 %v2273
          %2666 = vmatprep.subr.bf16.mxu0 %v2278
          %2667 = vmatpush1.bf16.msra.mxu0 %v2277
          %2668 = vmatprep.subr.bf16.mxu0 %v2282
          %2669 = vmatpush1.bf16.msra.mxu0 %v2281
          %2670 = vmatprep.subr.bf16.mxu0 %v2286
          %2671 = vmatpush1.bf16.msra.mxu0 %v2285
          %2672 = vmatprep.subr.bf16.mxu0 %v2290
          %2673 = vmatpush1.bf16.msra.mxu0 %v2289
          %2674 = vmatprep.subr.bf16.mxu0 %v2294
          %2675 = vmatpush1.bf16.msra.mxu0 %v2293
          %2676 = vmatprep.subr.bf16.mxu0 %v2298
          %2677 = vmatpush1.bf16.msra.mxu0 %v2297
          %2678 = vmatprep.mubr.bf16.mxu0 %v1624
          %2679 = vmatmul.mubr.bf16.gmra.mrb[0].mxu0 %v1623
          %v2680 = vpop.f32.mrb[0].mxu0
          %v2681 = vadd.f32 %v2608, %v2680
          %v2682 = vpop.f32.mrb[0].mxu0
          %v2683 = vadd.f32 %v2610, %v2682
          %v2684 = vpop.f32.mrb[0].mxu0
          %v2685 = vadd.f32 %v2612, %v2684
          %v2686 = vpop.f32.mrb[0].mxu0
          %v2687 = vadd.f32 %v2614, %v2686
          %2688 = vmatprep.mubr.bf16.mxu0 %v1628
          %2689 = vmatmul.mubr.bf16.gmra.mrb[0].mxu0 %v1627
          %v2690 = vpop.f32.mrb[0].mxu0
          %v2691 = vadd.f32 %v2618, %v2690
          %v2692 = vpop.f32.mrb[0].mxu0
          %v2693 = vadd.f32 %v2620, %v2692
          %v2694 = vpop.f32.mrb[0].mxu0
          %v2695 = vadd.f32 %v2622, %v2694
          %v2696 = vpop.f32.mrb[0].mxu0
          %v2697 = vadd.f32 %v2624, %v2696
          %2698 = vmatprep.mubr.bf16.mxu0 %v1632
          %2699 = vmatmul.mubr.bf16.gmra.mrb[0].mxu0 %v1631
          %v2700 = vpop.f32.mrb[0].mxu0
          %v2701 = vadd.f32 %v2628, %v2700
          %v2702 = vpop.f32.mrb[0].mxu0
          %v2703 = vadd.f32 %v2630, %v2702
          %v2704 = vpop.f32.mrb[0].mxu0
          %v2705 = vadd.f32 %v2632, %v2704
          %v2706 = vpop.f32.mrb[0].mxu0
          %v2707 = vadd.f32 %v2634, %v2706
          %2708 = vmatprep.mubr.bf16.mxu0 %v1636
          %2709 = vmatmul.mubr.bf16.gmra.mrb[0].mxu0 %v1635
          %v2710 = vpop.f32.mrb[0].mxu0
          %v2711 = vadd.f32 %v2638, %v2710
          %v2712 = vpop.f32.mrb[0].mxu0
          %v2713 = vadd.f32 %v2640, %v2712
          %v2714 = vpop.f32.mrb[0].mxu0
          %v2715 = vadd.f32 %v2642, %v2714
          %v2716 = vpop.f32.mrb[0].mxu0
          %v2717 = vadd.f32 %v2644, %v2716
          %2718 = vdwg.mxu0
          %2719 = vst [vmem:[%s335] sm:$0xff] %v2535
          %2720 = vst [vmem:[%s335 + $0x8] sm:$0xff] %v2537
          %2721 = vst [vmem:[%s335 + $0x10] sm:$0xff] %v2681
          %2722 = vst [vmem:[%s335 + $0x18] sm:$0xff] %v2683
          %2723 = vst [vmem:[%s335 + $0x20] sm:$0xff] %v2539
          %2724 = vst [vmem:[%s335 + $0x28] sm:$0xff] %v2541
          %2725 = vst [vmem:[%s335 + $0x30] sm:$0xff] %v2685
          %2726 = vst [vmem:[%s335 + $0x38] sm:$0xff] %v2687
          %2727 = vst [vmem:[%s335 + $0x40] sm:$0xff] %v2545
          %2728 = vst [vmem:[%s335 + $0x48] sm:$0xff] %v2547
          %2729 = vst [vmem:[%s335 + $0x50] sm:$0xff] %v2691
          %2730 = vst [vmem:[%s335 + $0x58] sm:$0xff] %v2693
          %2731 = vst [vmem:[%s335 + $0x60] sm:$0xff] %v2549
          %2732 = vst [vmem:[%s335 + $0x68] sm:$0xff] %v2551
          %2733 = vst [vmem:[%s335 + $0x70] sm:$0xff] %v2695
          %2734 = vst [vmem:[%s335 + $0x78] sm:$0xff] %v2697
          %2735 = vst [vmem:[%s335 + $0x80] sm:$0xff] %v2555
          %2736 = vst [vmem:[%s335 + $0x88] sm:$0xff] %v2557
          %2737 = vst [vmem:[%s335 + $0x90] sm:$0xff] %v2701
          %2738 = vst [vmem:[%s335 + $0x98] sm:$0xff] %v2703
          %2739 = vst [vmem:[%s335 + $0xa0] sm:$0xff] %v2559
          %2740 = vst [vmem:[%s335 + $0xa8] sm:$0xff] %v2561
          %2741 = vst [vmem:[%s335 + $0xb0] sm:$0xff] %v2705
          %2742 = vst [vmem:[%s335 + $0xb8] sm:$0xff] %v2707
          %2743 = vst [vmem:[%s335 + $0xc0] sm:$0xff] %v2565
          %2744 = vst [vmem:[%s335 + $0xc8] sm:$0xff] %v2567
          %2745 = vst [vmem:[%s335 + $0xd0] sm:$0xff] %v2711
          %2746 = vst [vmem:[%s335 + $0xd8] sm:$0xff] %v2713
          %2747 = vst [vmem:[%s335 + $0xe0] sm:$0xff] %v2569
          %2748 = vst [vmem:[%s335 + $0xe8] sm:$0xff] %v2571
          %2749 = vst [vmem:[%s335 + $0xf0] sm:$0xff] %v2715
          %2750 = vst [vmem:[%s335 + $0xf8] sm:$0xff] %v2717
        $region64: #{tpu_custom_call.1} parent=39 // pred_fallthru
          _
        %s2751 = sand.u32 %s161, 1
        %s2752 = scalar_lea.sflag [#allocation5], %s2751
        %s2753 = sand.u32 %s161, 1
        %s2754 = smul.addr %s2753, 256
        %s2755 = scalar_lea.vmem [#allocation12], %s2754
        // Predicated region
        $region65: #{tpu_custom_call.1} parent=39 // pred_check
          %p2756 = pneg %p171
        $region66: #{tpu_custom_call.1} parent=39 // pred_check_branch
          %2758 = sbr.rel (%p2756) target = $region68
        $region67: #{tpu_custom_call.1} parent=39 // pred_region
          %s2760 = ssub.s32 4096, 4096
          %2761 = vsyncadd %s2752, %s2760
          %s2762 = smul.addr %s30, 32
          %s2763 = smul.addr %s2762, 128
          %s2764 = scalar_lea.hbm %s5, %s2763
          %s2765 = sshll.u32 %s2755, 4
          %s2766 = int_to_ptr.vmem [resolvable:$true] %s2765
          %2771 = dma.vmem_to_hbm [thread:$0]  %s2766, 4096, %s2764, %s2752, 512, 512, 32
        $region68: #{tpu_custom_call.1} parent=39 // pred_fallthru
          _
      $region40: #{tpu_custom_call.1} parent=5 // pred_fallthru
        _
      %p2772 = scmp.le.s32.totalorder 2, %s21
      // Predicated region
      $region69: #{tpu_custom_call.1} parent=5 // pred_check
        %p2773 = pneg %p2772
      $region70: #{tpu_custom_call.1} parent=5 // pred_check_branch
        %2775 = sbr.rel (%p2773) target = $region72
      $region71: #{tpu_custom_call.1} parent=5 // pred_region
        %s2776 = ssub.s32 %s21, 2
        // Predicated region
        $region73: #{tpu_custom_call.1} parent=71 // pred_check
          %p2777 = pneg %p177
        $region74: #{tpu_custom_call.1} parent=71 // pred_check_branch
          %2779 = sbr.rel (%p2777) target = $region76
        $region75: #{tpu_custom_call.1} parent=71 // pred_region
          %s2780 = sand.u32 %s162, 1
          %s2781 = scalar_lea.sflag [#allocation5], %s2780
          %s2782 = sand.u32 %s162, 1
          %s2783 = smul.addr %s2782, 256
          %s2784 = scalar_lea.vmem [#allocation12], %s2783
          %2785 = dma.done %s2781, 4096
        $region76: #{tpu_custom_call.1} parent=71 // pred_fallthru
          _
      $region72: #{tpu_custom_call.1} parent=5 // pred_fallthru
        _
    $region6: #{tpu_custom_call.1} parent=1 // loop_footer
      %s25 = sadd.s32 1, %s21
    $region7: #{tpu_custom_call.1} parent=1 // loop_footer_branch
      %20 = sbr.rel target = $region3
    $region8: #{tpu_custom_call.1} parent=1 // loop_exit
      _
    %2786 = vsyncpa [#allocation4], 1
    %s2787 = scalar_lea.sflag [#allocation4], 1
    %2788 = vsyncpa %s2787, 1
    %2789 = vsyncpa [#allocation7], 1
    %s2790 = scalar_lea.sflag [#allocation7], 1
    %2791 = vsyncpa %s2790, 1
    %2792 = vsyncpa [#allocation10], 1
    %2793 = vsyncpa [#allocation5], 1
    %s2794 = scalar_lea.sflag [#allocation5], 1
    %2795 = vsyncpa %s2794, 1

</llo_original>
